<compile_context>
chip_gen: v7x
topology: tpu7x:2x2x1
jax: 0.10.0
libtpu: 0.0.40
codegen_flags: <defaults>
</compile_context>

<pallas_src>
import functools
import math

import jax
import jax.numpy as jnp
import numpy as np
from jax import lax
from jax.experimental import pallas as pl
from jax.experimental.pallas import tpu as pltpu

_SELU_ALPHA = 1.6732632423543772
_SELU_SCALE = 1.0507009873554805
_BN_EPS = 1e-5
_VMEM_LIMIT = 32 * 1024 * 1024          # safe on v5e/v6e/v7x; tiles here are tiny


def _round_up(v, m):
    return ((v + m - 1) // m) * m


def _conv_taps(x, halo, w_ref):
    """Fused dual-conv on one lane tile.

    x:    (C, T)            input tile (compute dtype)
    halo: (C, 2*pad)        [left boundary cols | right boundary cols] for this tile
    w_ref:(K, C_out_pad, C) stacked per-tap weights (intra block-diag + inter @ centre)
    returns (C_out_pad, T) f32
    """
    K = w_ref.shape[0]
    pad = (K - 1) // 2
    T = x.shape[1]
    if pad:
        # Value-space halo concat -> per-tap windows are static lane-shifted slices.
        ext = jnp.concatenate([halo[:, :pad], x, halo[:, pad:]], axis=1)  # (C, T+2*pad)
    else:
        ext = x
    y = jnp.dot(w_ref[0], ext[:, 0:T], preferred_element_type=jnp.float32)
    for k in range(1, K):                       # K=3: tiny static unroll
        y = y + jnp.dot(w_ref[k], ext[:, k:k + T],
                        preferred_element_type=jnp.float32)
    return y


def _conv_stats_kernel(x_ref, halo_ref, w_ref, stats_ref):
    """Pass 1: accumulate per-channel sum / sumsq of the conv output across all tiles.

    stats_ref has a constant block index -> stays VMEM-resident across the whole grid
    (both axes 'arbitrary'); written back to HBM once at the end."""
    @pl.when((pl.program_id(0) == 0) & (pl.program_id(1) == 0))
    def _():
        stats_ref[...] = jnp.zeros_like(stats_ref)

    y = _conv_taps(x_ref[...], halo_ref[...], w_ref)          # (C_out_pad, T) f32
    stats_ref[...] += jnp.concatenate(
        [jnp.sum(y, axis=1, keepdims=True),
         jnp.sum(y * y, axis=1, keepdims=True)], axis=1)       # one-pass sum / sumsq


def _conv_bn_act_kernel(x_ref, halo_ref, w_ref, sc_ref, o_ref, *, c_out, apply_act):
    """Pass 2 (embarrassingly parallel): conv -> (scale,shift) -> SELU -> final layout."""
    y = _conv_taps(x_ref[...], halo_ref[...], w_ref)           # (C_out_pad, T) f32
    if apply_act:
        y = y * sc_ref[:, 0:1] + sc_ref[:, 1:2]                # folded BN (f32)
        y = _SELU_SCALE * jnp.where(y > 0, y, _SELU_ALPHA * (jnp.exp(y) - 1.0))
    # Slice off the padded output-channel rows; lanes stay dense (full tile_n store).
    o_ref[...] = y[:c_out].astype(o_ref.dtype)


def i2c_block_v1(x, w_taps, gamma, beta, *, ac_flag=True, tile_n_max=512,
                 compute_dtype=jnp.float32):
    """x: (B, C, N); w_taps: (K, C_out_pad, C); gamma/beta: (C_total,) -> (B, C_total, N)."""
    B, C, N = x.shape
    K, C_out_pad, Cw = w_taps.shape
    assert Cw == C and K == 3, "halo builder assumes intra_kernel_size=3 (module default)"
    C_total = gamma.shape[0]

    # ---- lane tiling: full N when small, else multiple-of-128 tiles (pad N if needed) ----
    if N <= tile_n_max:
        tile_n, n_w = N, N
    else:
        tile_n = tile_n_max
        n_w = _round_up(N, tile_n)
    num_tiles = n_w // tile_n
    x_w = x if n_w == N else jnp.pad(x, ((0, 0), (0, 0), (0, n_w - N)))

    # ---- tiny per-tile halo columns (replaces any im2col / zero-pad staging) ----
    # left[:, :, j] = x[:, :, j*T-1] (0 for j==0); right[:, :, j] = x[:, :, (j+1)*T] (0 last)
    last_cols = x_w[:, :, tile_n - 1::tile_n]                      # (B, C, num_tiles)
    first_cols = x_w[:, :, ::tile_n]                               # (B, C, num_tiles)
    left = jnp.pad(last_cols[:, :, :num_tiles - 1], ((0, 0), (0, 0), (1, 0)))
    right = jnp.pad(first_cols[:, :, 1:], ((0, 0), (0, 0), (0, 1)))
    halo = jnp.stack([left, right], axis=-1).transpose(0, 2, 1, 3)  # (B, num_tiles, C, 2)

    x_w = x_w.astype(compute_dtype)
    halo = halo.astype(compute_dtype)
    w_c = w_taps.astype(compute_dtype)

    grid = (B, num_tiles)
    x_spec = pl.BlockSpec((None, C, tile_n), lambda b, j: (b, 0, j))
    halo_spec = pl.BlockSpec((None, None, C, 2), lambda b, j: (b, j, 0, 0))
    w_spec = pl.BlockSpec((K, C_out_pad, C), lambda b, j: (0, 0, 0))   # VMEM-resident
    sc_spec = pl.BlockSpec((C_out_pad, 2), lambda b, j: (0, 0))        # VMEM-resident

    if ac_flag:
        # ---- pass 1: grid-safe BN statistics (sequential accumulation) ----
        stats = pl.pallas_call(
            _conv_stats_kernel,
            grid=grid,
            in_specs=[x_spec, halo_spec, w_spec],
            out_specs=pl.BlockSpec((C_out_pad, 2), lambda b, j: (0, 0)),
            out_shape=jax.ShapeDtypeStruct((C_out_pad, 2), jnp.float32),
            compiler_params=pltpu.CompilerParams(
                dimension_semantics=("arbitrary", "arbitrary"),
                vmem_limit_bytes=_VMEM_LIMIT),
        )(x_w, halo, w_c)

        # Fold BN (training-mode, biased var over the true B*N count) + gamma/beta into
        # per-channel scale/shift (tiny (C_out_pad,) math; stays in f32).
        count = float(B * N)                      # padded lanes contribute exact zeros
        mean = stats[:, 0] / count
        var = stats[:, 1] / count - mean * mean
        rstd = lax.rsqrt(var + _BN_EPS)
        gamma_p = jnp.zeros((C_out_pad,), jnp.float32).at[:C_total].set(gamma)
        beta_p = jnp.zeros((C_out_pad,), jnp.float32).at[:C_total].set(beta)
        scale = gamma_p * rstd
        shift = beta_p - mean * scale
        sc = jnp.stack([scale, shift], axis=1)                      # (C_out_pad, 2)
    else:
        sc = jnp.zeros((C_out_pad, 2), jnp.float32)

    # ---- pass 2: conv + normalize + SELU, fully parallel, final layout written directly ----
    kernel2 = functools.partial(_conv_bn_act_kernel, c_out=C_total, apply_act=ac_flag)
    out = pl.pallas_call(
        kernel2,
        grid=grid,
        in_specs=[x_spec, halo_spec, w_spec, sc_spec],
        out_specs=pl.BlockSpec((None, C_total, tile_n), lambda b, j: (b, 0, j)),
        out_shape=jax.ShapeDtypeStruct((B, C_total, n_w), jnp.float32),
        compiler_params=pltpu.CompilerParams(
            dimension_semantics=("parallel", "parallel"),
            vmem_limit_bytes=_VMEM_LIMIT),
    )(x_w, halo, w_c, sc)

    return out if n_w == N else out[:, :, :N]


def _build_params(key, C, groups, e, intra_k=3, inter_k=1):
    """Deterministic kaiming-normal-style init matching the PyTorch shapes."""
    gw = C // groups
    C_inter = gw * e
    C_intra = C * e
    k1, k2 = jax.random.split(key)
    w_inter = jax.random.normal(k1, (C_inter, C, inter_k), jnp.float32) \
        * math.sqrt(2.0 / (C * inter_k))
    w_intra = jax.random.normal(k2, (C_intra, gw, intra_k), jnp.float32) \
        * math.sqrt(2.0 / (gw * intra_k))
    C_total = C_intra + C_inter
    gamma = jnp.ones((C_total,), jnp.float32)
    beta = jnp.zeros((C_total,), jnp.float32)
    return w_inter, w_intra, gamma, beta


def _build_w_taps(w_inter, w_intra_small, groups):
    """Stack grouped intra (block-diagonal per tap) + 1x1 inter (centre tap) into
    one (K, C_out_pad, C) slab with output channels padded to a sublane multiple."""
    C_intra, gw, K = w_intra_small.shape
    C_inter, C, inter_k = w_inter.shape
    assert inter_k == 1 and K % 2 == 1
    C_total = C_intra + C_inter
    C_out_pad = _round_up(C_total, 8)          # f32 sublane multiple (zero pad rows)
    opg = C_intra // groups
    w = jnp.zeros((K, C_out_pad, C), jnp.float32)
    for g in range(groups):
        blk = jnp.transpose(w_intra_small[g * opg:(g + 1) * opg], (2, 0, 1))  # (K, opg, gw)
        w = w.at[:, g * opg:(g + 1) * opg, g * gw:(g + 1) * gw].set(blk)
    w = w.at[(K - 1) // 2, C_intra:C_total, :].set(w_inter[:, :, 0])
    return w


def _reference(x, w_inter, w_intra_small, groups):
    """Pure-JAX reference mirroring the PyTorch forward (training-mode BN, gamma=1, beta=0)."""
    dn = ('NCH', 'OIH', 'NCH')
    inter = lax.conv_general_dilated(x, w_inter, (1,), [(0, 0)], dimension_numbers=dn)
    pad = (w_intra_small.shape[-1] - 1) // 2
    intra = lax.conv_general_dilated(x, w_intra_small, (1,), [(pad, pad)],
                                     dimension_numbers=dn, feature_group_count=groups)
    out = jnp.concatenate([intra, inter], axis=1)
    mean = out.mean(axis=(0, 2), keepdims=True)
    var = ((out - mean) ** 2).mean(axis=(0, 2), keepdims=True)
    out = (out - mean) / jnp.sqrt(var + _BN_EPS)
    return jax.nn.selu(out)


if __name__ == "__main__":
    # Module defaults: groups=10, expansion_rate=1, intra_k=3, inter_k=1, stride=1.
    B, C, N = 2, 20, 16            # C divisible by groups -> group_width = 2
    groups, e = 10, 1

    key = jax.random.PRNGKey(0)
    kx, kp = jax.random.split(key)
    x = jax.random.normal(kx, (B, C, N), jnp.float32)

    w_inter, w_intra_small, gamma, beta = _build_params(kp, C, groups, e)
    w_taps = _build_w_taps(w_inter, w_intra_small, groups)      # (3, C_out_pad, C)

    fwd = jax.jit(functools.partial(i2c_block_v1, ac_flag=True))
    out = jax.block_until_ready(fwd(x, w_taps, gamma, beta))

    ref = _reference(x, w_inter, w_intra_small, groups)
    np.testing.assert_allclose(np.asarray(out), np.asarray(ref), rtol=1e-4, atol=1e-4)
    assert out.shape == (B, (C + C // groups) * e, N)

    print("KERNEL_OK")
</pallas_src>

<mosaic_0001>
module attributes {stable_mosaic.version = 11 : i64} {
  func.func @_conv_stats_kernel(%arg0: i32, %arg1: i32, %arg2: memref<1x20x16xf32, #tpu.memory_space<vmem>>, %arg3: memref<1x1x20x2xf32, #tpu.memory_space<vmem>>, %arg4: memref<3x24x20xf32, #tpu.memory_space<vmem>>, %arg5: memref<24x2xf32, #tpu.memory_space<vmem>>) attributes {dimension_semantics = [#tpu.dimension_semantics<arbitrary>, #tpu.dimension_semantics<arbitrary>], iteration_bounds = array<i64: 2, 1>, scalar_prefetch = 0 : i64, scratch_operands = 0 : i64, tpu.core_type = #tpu.core_type<tc>, window_params = [{transform_indices = @transform_0, window_bounds = array<i64: 1, 20, 16>}, {transform_indices = @transform_1, window_bounds = array<i64: 1, 1, 20, 2>}, {pipeline_mode = #tpu.pipeline_mode<synchronous>, transform_indices = @transform_2, window_bounds = array<i64: 3, 24, 20>}, {pipeline_mode = #tpu.pipeline_mode<synchronous>, transform_indices = @transform_3, window_bounds = array<i64: 24, 2>}]} {
    %c0_i32 = arith.constant 0 : i32
    %0 = arith.cmpi eq, %arg0, %c0_i32 : i32
    %c0_i32_0 = arith.constant 0 : i32
    %1 = arith.cmpi eq, %arg1, %c0_i32_0 : i32
    %2 = arith.andi %0, %1 : i1
    %3 = arith.extui %2 : i1 to i32
    %c0_i32_1 = arith.constant 0 : i32
    %4 = arith.cmpi ne, %3, %c0_i32_1 : i32
    scf.if %4 {
      %cst_23 = arith.constant 0.000000e+00 : f32
      %35 = vector.broadcast %cst_23 : f32 to vector<24x2xf32>
      %c0_24 = arith.constant 0 : index
      %c0_25 = arith.constant 0 : index
      %36 = vector.load %arg5[%c0_24, %c0_25] : memref<24x2xf32, #tpu.memory_space<vmem>>, vector<24x2xf32>
      tpu.vector_store %arg5[%c0_24, %c0_25], %35 {strides = array<i32>} : memref<24x2xf32, #tpu.memory_space<vmem>>, vector<24x2xf32>,
    } else {
    }
    %c0 = arith.constant 0 : index
    %c0_2 = arith.constant 0 : index
    %c0_3 = arith.constant 0 : index
    %5 = vector.load %arg2[%c0, %c0_2, %c0_3] : memref<1x20x16xf32, #tpu.memory_space<vmem>>, vector<1x20x16xf32>
    %6 = vector.shape_cast %5 : vector<1x20x16xf32> to vector<20x16xf32>
    %c0_4 = arith.constant 0 : index
    %c0_5 = arith.constant 0 : index
    %c0_6 = arith.constant 0 : index
    %c0_7 = arith.constant 0 : index
    %7 = vector.load %arg3[%c0_4, %c0_5, %c0_6, %c0_7] : memref<1x1x20x2xf32, #tpu.memory_space<vmem>>, vector<1x1x20x2xf32>
    %8 = vector.shape_cast %7 : vector<1x1x20x2xf32> to vector<20x2xf32>
    %9 = vector.extract_strided_slice %8 {offsets = [0, 0], sizes = [20, 1], strides = [1, 1]} : vector<20x2xf32> to vector<20x1xf32>
    %10 = vector.extract_strided_slice %8 {offsets = [0, 1], sizes = [20, 1], strides = [1, 1]} : vector<20x2xf32> to vector<20x1xf32>
    %11 = tpu.concatenate %9, %6, %10 in 1 : vector<20x1xf32>, vector<20x16xf32>, vector<20x1xf32> -> vector<20x18xf32>
    %c0_8 = arith.constant 0 : index
    %c0_9 = arith.constant 0 : index
    %c0_10 = arith.constant 0 : index
    %12 = vector.load %arg4[%c0_8, %c0_9, %c0_10] : memref<3x24x20xf32, #tpu.memory_space<vmem>>, vector<1x24x20xf32>
    %13 = vector.shape_cast %12 : vector<1x24x20xf32> to vector<24x20xf32>
    %14 = vector.extract_strided_slice %11 {offsets = [0, 0], sizes = [20, 16], strides = [1, 1]} : vector<20x18xf32> to vector<20x16xf32>
    %cst = arith.constant dense<0.000000e+00> : vector<24x16xf32>
    %15 = tpu.matmul %13, %14, %cst {dimension_numbers = #tpu.dot_dimension_numbers<[1], [0], [0], [1], [0, 0, 1, 1], [], []>} : vector<24x20xf32>, vector<20x16xf32>, vector<24x16xf32> -> vector<24x16xf32>
    %c1 = arith.constant 1 : index
    %c0_11 = arith.constant 0 : index
    %c0_12 = arith.constant 0 : index
    %16 = vector.load %arg4[%c1, %c0_11, %c0_12] : memref<3x24x20xf32, #tpu.memory_space<vmem>>, vector<1x24x20xf32>
    %17 = vector.shape_cast %16 : vector<1x24x20xf32> to vector<24x20xf32>
    %18 = vector.extract_strided_slice %11 {offsets = [0, 1], sizes = [20, 16], strides = [1, 1]} : vector<20x18xf32> to vector<20x16xf32>
    %cst_13 = arith.constant dense<0.000000e+00> : vector<24x16xf32>
    %19 = tpu.matmul %17, %18, %cst_13 {dimension_numbers = #tpu.dot_dimension_numbers<[1], [0], [0], [1], [0, 0, 1, 1], [], []>} : vector<24x20xf32>, vector<20x16xf32>, vector<24x16xf32> -> vector<24x16xf32>
    %20 = arith.addf %15, %19 : vector<24x16xf32>
    %c2 = arith.constant 2 : index
    %c0_14 = arith.constant 0 : index
    %c0_15 = arith.constant 0 : index
    %21 = vector.load %arg4[%c2, %c0_14, %c0_15] : memref<3x24x20xf32, #tpu.memory_space<vmem>>, vector<1x24x20xf32>
    %22 = vector.shape_cast %21 : vector<1x24x20xf32> to vector<24x20xf32>
    %23 = vector.extract_strided_slice %11 {offsets = [0, 2], sizes = [20, 16], strides = [1, 1]} : vector<20x18xf32> to vector<20x16xf32>
    %cst_16 = arith.constant dense<0.000000e+00> : vector<24x16xf32>
    %24 = tpu.matmul %22, %23, %cst_16 {dimension_numbers = #tpu.dot_dimension_numbers<[1], [0], [0], [1], [0, 0, 1, 1], [], []>} : vector<24x20xf32>, vector<20x16xf32>, vector<24x16xf32> -> vector<24x16xf32>
    %25 = arith.addf %20, %24 : vector<24x16xf32>
    %c0_17 = arith.constant 0 : index
    %c0_18 = arith.constant 0 : index
    %26 = vector.load %arg5[%c0_17, %c0_18] : memref<24x2xf32, #tpu.memory_space<vmem>>, vector<24x2xf32>
    %cst_19 = arith.constant dense<0.000000e+00> : vector<24xf32>
    %27 = vector.multi_reduction <add>, %25, %cst_19 [1] : vector<24x16xf32> to vector<24xf32>
    %28 = vector.shape_cast %27 : vector<24xf32> to vector<24x1xf32>
    %29 = arith.mulf %25, %25 : vector<24x16xf32>
    %cst_20 = arith.constant dense<0.000000e+00> : vector<24xf32>
    %30 = vector.multi_reduction <add>, %29, %cst_20 [1] : vector<24x16xf32> to vector<24xf32>
    %31 = vector.shape_cast %30 : vector<24xf32> to vector<24x1xf32>
    %32 = tpu.concatenate %28, %31 in 1 : vector<24x1xf32>, vector<24x1xf32> -> vector<24x2xf32>
    %33 = arith.addf %26, %32 : vector<24x2xf32>
    %c0_21 = arith.constant 0 : index
    %c0_22 = arith.constant 0 : index
    %34 = vector.load %arg5[%c0_21, %c0_22] : memref<24x2xf32, #tpu.memory_space<vmem>>, vector<24x2xf32>
    tpu.vector_store %arg5[%c0_21, %c0_22], %33 {strides = array<i32>} : memref<24x2xf32, #tpu.memory_space<vmem>>, vector<24x2xf32>,
    return
  }
  func.func @transform_0(%arg0: i32, %arg1: i32) -> (i32, i32, i32) {
    %c0_i32 = arith.constant 0 : i32
    %c0_i32_0 = arith.constant 0 : i32
    return %arg0, %c0_i32, %arg1 : i32, i32, i32
  }
  func.func @transform_1(%arg0: i32, %arg1: i32) -> (i32, i32, i32, i32) {
    %c0_i32 = arith.constant 0 : i32
    %c0_i32_0 = arith.constant 0 : i32
    %c0_i32_1 = arith.constant 0 : i32
    return %arg0, %arg1, %c0_i32, %c0_i32_0 : i32, i32, i32, i32
  }
  func.func @transform_2(%arg0: i32, %arg1: i32) -> (i32, i32, i32) {
    %c0_i32 = arith.constant 0 : i32
    %c0_i32_0 = arith.constant 0 : i32
    %c0_i32_1 = arith.constant 0 : i32
    %c0_i32_2 = arith.constant 0 : i32
    return %c0_i32, %c0_i32_0, %c0_i32_1 : i32, i32, i32
  }
  func.func @transform_3(%arg0: i32, %arg1: i32) -> (i32, i32) {
    %c0_i32 = arith.constant 0 : i32
    %c0_i32_0 = arith.constant 0 : i32
    %c0_i32_1 = arith.constant 0 : i32
    return %c0_i32, %c0_i32_0 : i32, i32
  }
}

module attributes {stable_mosaic.version = 11 : i64} {
  func.func @_conv_bn_act_kernel(%arg0: i32, %arg1: i32, %arg2: memref<1x20x16xf32, #tpu.memory_space<vmem>>, %arg3: memref<1x1x20x2xf32, #tpu.memory_space<vmem>>, %arg4: memref<3x24x20xf32, #tpu.memory_space<vmem>>, %arg5: memref<24x2xf32, #tpu.memory_space<vmem>>, %arg6: memref<1x22x16xf32, #tpu.memory_space<vmem>>) attributes {dimension_semantics = [#tpu.dimension_semantics<parallel>, #tpu.dimension_semantics<parallel>], iteration_bounds = array<i64: 2, 1>, scalar_prefetch = 0 : i64, scratch_operands = 0 : i64, tpu.core_type = #tpu.core_type<tc>, window_params = [{transform_indices = @transform_0, window_bounds = array<i64: 1, 20, 16>}, {transform_indices = @transform_1, window_bounds = array<i64: 1, 1, 20, 2>}, {pipeline_mode = #tpu.pipeline_mode<synchronous>, transform_indices = @transform_2, window_bounds = array<i64: 3, 24, 20>}, {pipeline_mode = #tpu.pipeline_mode<synchronous>, transform_indices = @transform_3, window_bounds = array<i64: 24, 2>}, {transform_indices = @transform_4, window_bounds = array<i64: 1, 22, 16>}]} {
    %c0 = arith.constant 0 : index
    %c0_0 = arith.constant 0 : index
    %c0_1 = arith.constant 0 : index
    %0 = vector.load %arg2[%c0, %c0_0, %c0_1] : memref<1x20x16xf32, #tpu.memory_space<vmem>>, vector<1x20x16xf32>
    %1 = vector.shape_cast %0 : vector<1x20x16xf32> to vector<20x16xf32>
    %c0_2 = arith.constant 0 : index
    %c0_3 = arith.constant 0 : index
    %c0_4 = arith.constant 0 : index
    %c0_5 = arith.constant 0 : index
    %2 = vector.load %arg3[%c0_2, %c0_3, %c0_4, %c0_5] : memref<1x1x20x2xf32, #tpu.memory_space<vmem>>, vector<1x1x20x2xf32>
    %3 = vector.shape_cast %2 : vector<1x1x20x2xf32> to vector<20x2xf32>
    %4 = vector.extract_strided_slice %3 {offsets = [0, 0], sizes = [20, 1], strides = [1, 1]} : vector<20x2xf32> to vector<20x1xf32>
    %5 = vector.extract_strided_slice %3 {offsets = [0, 1], sizes = [20, 1], strides = [1, 1]} : vector<20x2xf32> to vector<20x1xf32>
    %6 = tpu.concatenate %4, %1, %5 in 1 : vector<20x1xf32>, vector<20x16xf32>, vector<20x1xf32> -> vector<20x18xf32>
    %c0_6 = arith.constant 0 : index
    %c0_7 = arith.constant 0 : index
    %c0_8 = arith.constant 0 : index
    %7 = vector.load %arg4[%c0_6, %c0_7, %c0_8] : memref<3x24x20xf32, #tpu.memory_space<vmem>>, vector<1x24x20xf32>
    %8 = vector.shape_cast %7 : vector<1x24x20xf32> to vector<24x20xf32>
    %9 = vector.extract_strided_slice %6 {offsets = [0, 0], sizes = [20, 16], strides = [1, 1]} : vector<20x18xf32> to vector<20x16xf32>
    %cst = arith.constant dense<0.000000e+00> : vector<24x16xf32>
    %10 = tpu.matmul %8, %9, %cst {dimension_numbers = #tpu.dot_dimension_numbers<[1], [0], [0], [1], [0, 0, 1, 1], [], []>} : vector<24x20xf32>, vector<20x16xf32>, vector<24x16xf32> -> vector<24x16xf32>
    %c1 = arith.constant 1 : index
    %c0_9 = arith.constant 0 : index
    %c0_10 = arith.constant 0 : index
    %11 = vector.load %arg4[%c1, %c0_9, %c0_10] : memref<3x24x20xf32, #tpu.memory_space<vmem>>, vector<1x24x20xf32>
    %12 = vector.shape_cast %11 : vector<1x24x20xf32> to vector<24x20xf32>
    %13 = vector.extract_strided_slice %6 {offsets = [0, 1], sizes = [20, 16], strides = [1, 1]} : vector<20x18xf32> to vector<20x16xf32>
    %cst_11 = arith.constant dense<0.000000e+00> : vector<24x16xf32>
    %14 = tpu.matmul %12, %13, %cst_11 {dimension_numbers = #tpu.dot_dimension_numbers<[1], [0], [0], [1], [0, 0, 1, 1], [], []>} : vector<24x20xf32>, vector<20x16xf32>, vector<24x16xf32> -> vector<24x16xf32>
    %15 = arith.addf %10, %14 : vector<24x16xf32>
    %c2 = arith.constant 2 : index
    %c0_12 = arith.constant 0 : index
    %c0_13 = arith.constant 0 : index
    %16 = vector.load %arg4[%c2, %c0_12, %c0_13] : memref<3x24x20xf32, #tpu.memory_space<vmem>>, vector<1x24x20xf32>
    %17 = vector.shape_cast %16 : vector<1x24x20xf32> to vector<24x20xf32>
    %18 = vector.extract_strided_slice %6 {offsets = [0, 2], sizes = [20, 16], strides = [1, 1]} : vector<20x18xf32> to vector<20x16xf32>
    %cst_14 = arith.constant dense<0.000000e+00> : vector<24x16xf32>
    %19 = tpu.matmul %17, %18, %cst_14 {dimension_numbers = #tpu.dot_dimension_numbers<[1], [0], [0], [1], [0, 0, 1, 1], [], []>} : vector<24x20xf32>, vector<20x16xf32>, vector<24x16xf32> -> vector<24x16xf32>
    %20 = arith.addf %15, %19 : vector<24x16xf32>
    %c0_15 = arith.constant 0 : index
    %c0_16 = arith.constant 0 : index
    %21 = vector.load %arg5[%c0_15, %c0_16] : memref<24x2xf32, #tpu.memory_space<vmem>>, vector<24x1xf32>
    %22 = vector.broadcast %21 : vector<24x1xf32> to vector<24x16xf32>
    %23 = arith.mulf %20, %22 : vector<24x16xf32>
    %c0_17 = arith.constant 0 : index
    %c1_18 = arith.constant 1 : index
    %24 = vector.load %arg5[%c0_17, %c1_18] : memref<24x2xf32, #tpu.memory_space<vmem>>, vector<24x1xf32>
    %25 = vector.broadcast %24 : vector<24x1xf32> to vector<24x16xf32>
    %26 = arith.addf %23, %25 : vector<24x16xf32>
    %cst_19 = arith.constant 0.000000e+00 : f32
    %27 = vector.broadcast %cst_19 : f32 to vector<24x16xf32>
    %28 = arith.cmpf ogt, %26, %27 : vector<24x16xf32>
    %29 = math.exp %26 : vector<24x16xf32>
    %cst_20 = arith.constant 1.000000e+00 : f32
    %30 = vector.broadcast %cst_20 : f32 to vector<24x16xf32>
    %31 = arith.subf %29, %30 : vector<24x16xf32>
    %cst_21 = arith.constant 1.67326319 : f32
    %32 = vector.broadcast %cst_21 : f32 to vector<24x16xf32>
    %33 = arith.mulf %32, %31 : vector<24x16xf32>
    %34 = arith.select %28, %26, %33 : vector<24x16xi1>, vector<24x16xf32>
    %cst_22 = arith.constant 1.05070102 : f32
    %35 = vector.broadcast %cst_22 : f32 to vector<24x16xf32>
    %36 = arith.mulf %35, %34 : vector<24x16xf32>
    %37 = vector.extract_strided_slice %36 {offsets = [0, 0], sizes = [22, 16], strides = [1, 1]} : vector<24x16xf32> to vector<22x16xf32>
    %c0_23 = arith.constant 0 : index
    %c0_24 = arith.constant 0 : index
    %c0_25 = arith.constant 0 : index
    %38 = vector.load %arg6[%c0_23, %c0_24, %c0_25] : memref<1x22x16xf32, #tpu.memory_space<vmem>>, vector<1x22x16xf32>
    %39 = vector.shape_cast %38 : vector<1x22x16xf32> to vector<22x16xf32>
    %40 = vector.shape_cast %37 : vector<22x16xf32> to vector<1x22x16xf32>
    tpu.vector_store %arg6[%c0_23, %c0_24, %c0_25], %40 {strides = array<i32>} : memref<1x22x16xf32, #tpu.memory_space<vmem>>, vector<1x22x16xf32>,
    return
  }
  func.func @transform_0(%arg0: i32, %arg1: i32) -> (i32, i32, i32) {
    %c0_i32 = arith.constant 0 : i32
    %c0_i32_0 = arith.constant 0 : i32
    return %arg0, %c0_i32, %arg1 : i32, i32, i32
  }
  func.func @transform_1(%arg0: i32, %arg1: i32) -> (i32, i32, i32, i32) {
    %c0_i32 = arith.constant 0 : i32
    %c0_i32_0 = arith.constant 0 : i32
    %c0_i32_1 = arith.constant 0 : i32
    return %arg0, %arg1, %c0_i32, %c0_i32_0 : i32, i32, i32, i32
  }
  func.func @transform_2(%arg0: i32, %arg1: i32) -> (i32, i32, i32) {
    %c0_i32 = arith.constant 0 : i32
    %c0_i32_0 = arith.constant 0 : i32
    %c0_i32_1 = arith.constant 0 : i32
    %c0_i32_2 = arith.constant 0 : i32
    return %c0_i32, %c0_i32_0, %c0_i32_1 : i32, i32, i32
  }
  func.func @transform_3(%arg0: i32, %arg1: i32) -> (i32, i32) {
    %c0_i32 = arith.constant 0 : i32
    %c0_i32_0 = arith.constant 0 : i32
    %c0_i32_1 = arith.constant 0 : i32
    return %c0_i32, %c0_i32_0 : i32, i32
  }
  func.func @transform_4(%arg0: i32, %arg1: i32) -> (i32, i32, i32) {
    %c0_i32 = arith.constant 0 : i32
    %c0_i32_0 = arith.constant 0 : i32
    return %arg0, %c0_i32, %arg1 : i32, i32, i32
  }
}

</mosaic_0001>

<llo_original>
// kernel: i2c_block_v1.2
$region0: #{i2c_block_v1.2}
  #allocation0 [shape = 'u32[]', space=smem, size = 0x4, offset = 0x4, fixed_abs, tag = 'smem constant byte address 0x4 - core index']
  #allocation1 [shape = 'u32[144,128]{1,0:T(1,128)}', space=vmem, size = 0x12000, scoped, tag = 'internal scratch']
  %s0 = inlined_call_operand.vmem [shape: f32[2,20,16], index: 0, kind: input, shape index: {}]
  %s1 = inlined_call_operand.vmem [shape: f32[2,1,20,2], index: 1, kind: input, shape index: {}]
  %s2 = inlined_call_operand.vmem [shape: f32[3,24,20], index: 2, kind: input, shape index: {}]
  %s3 = inlined_call_operand.vmem [shape: f32[24,2], index: 3, kind: output, shape index: {}]
  %s4 = sld [smem:[#allocation0]]
  $region49: #{i2c_block_v1.2} parent=0
    _
  %s6 = ssub.s32 1, %s4
  %s7 = scalar_select 0, %s6, %s4
  loop: start=0, step=1, limit=4
  $region2: #{i2c_block_v1.2} parent=0 // loop_pre_header
    _
  $region3: #{i2c_block_v1.2} parent=0 // loop_header
    %s9 = sphi 0, %s13
    %p10 = scmp.ge.s32.totalorder %s9, 4
    %s16 = sphi 0, %s28
    %s17 = sphi 0, %s24
    %s18 = sphi 0, %s16
    %s19 = sphi 0, %s17
    %s20 = sphi 0, %s18
    %s21 = sphi 0, %s19
    %s33 = sphi 0, %s35
    %s36 = sphi 0, %s33
    %s37 = sphi 0, %s36
    %s53 = sphi 0, %s37
    %s61 = sphi 0, %s63
    %s64 = sphi 0, %s61
    %s65 = sphi 0, %s64
    %s81 = sphi 0, %s65
    %s85 = sphi 0, %s85
    %s87 = sphi 0, %s85
    %s88 = sphi 0, %s87
    %s102 = sphi 0, %s88
    %s106 = sphi 0, %s106
    %s108 = sphi 0, %s106
    %s109 = sphi 0, %s108
    %s123 = sphi 0, %s109
  $region4: #{i2c_block_v1.2} parent=0 // loop_header_branch
    %12 = sbr.rel (%p10) target = $region8
  $region5: #{i2c_block_v1.2} parent=0 // loop_body
    %s14 = ssub.s32 %s9, 1
    %s15 = ssub.s32 %s9, 2
    %s22 = sadd.s32 1, %s17
    %p23 = scmp.ge.s32.totalorder %s22, 1
    %s24 = scalar_select %p23, 0, %s22
    %s25 = sadd.s32 1, %s16
    %s26 = scalar_select %p23, %s25, %s16
    %p27 = scmp.ge.s32.totalorder %s26, 2
    %s28 = scalar_select %p27, 0, %s26
    %s29 = ssub.s32 %s16, %s28
    %s30 = ssub.s32 %s17, %s24
    %s31 = sor.u32 %s29, %s30
    %p32 = scmp.eq.s32.totalorder %s31, 0
    %s34 = sadd.s32 %s33, 1
    %s35 = scalar_select %p32, %s33, %s34
    %p38 = pneg %p32
    %p39 = scmp.eq.s32.totalorder %s9, 1
    %p40 = por %p38, %p39
    %p41 = scmp.ne.s32.totalorder %s33, %s36
    %p42 = scmp.eq.s32.totalorder %s9, 0
    %p43 = por %p41, %p42
    %p44 = scmp.ne.s32.totalorder %s33, %s36
    %p45 = scmp.eq.s32.totalorder %s14, 1
    %p46 = por %p44, %p45
    %p47 = scmp.ne.s32.totalorder %s36, %s37
    %p48 = scmp.eq.s32.totalorder %s14, 0
    %p49 = por %p47, %p48
    %p50 = scmp.ne.s32.totalorder %s36, %s37
    %p51 = scmp.eq.s32.totalorder %s15, 1
    %p52 = por %p50, %p51
    %p54 = scmp.ne.s32.totalorder %s37, %s53
    %p55 = scmp.eq.s32.totalorder %s15, 0
    %p56 = por %p54, %p55
    %s57 = ssub.s32 %s16, %s28
    %s58 = ssub.s32 %s17, %s24
    %s59 = sor.u32 %s57, %s58
    %p60 = scmp.eq.s32.totalorder %s59, 0
    %s62 = sadd.s32 %s61, 1
    %s63 = scalar_select %p60, %s61, %s62
    %p66 = pneg %p60
    %p67 = scmp.eq.s32.totalorder %s9, 1
    %p68 = por %p66, %p67
    %p69 = scmp.ne.s32.totalorder %s61, %s64
    %p70 = scmp.eq.s32.totalorder %s9, 0
    %p71 = por %p69, %p70
    %p72 = scmp.ne.s32.totalorder %s61, %s64
    %p73 = scmp.eq.s32.totalorder %s14, 1
    %p74 = por %p72, %p73
    %p75 = scmp.ne.s32.totalorder %s64, %s65
    %p76 = scmp.eq.s32.totalorder %s14, 0
    %p77 = por %p75, %p76
    %p78 = scmp.ne.s32.totalorder %s64, %s65
    %p79 = scmp.eq.s32.totalorder %s15, 1
    %p80 = por %p78, %p79
    %p82 = scmp.ne.s32.totalorder %s65, %s81
    %p83 = scmp.eq.s32.totalorder %s15, 0
    %p84 = por %p82, %p83
    %s86 = sadd.s32 %s85, 1
    %p89 = scmp.eq.s32.totalorder %s9, 1
    %p90 = scmp.ne.s32.totalorder %s85, %s87
    %p91 = scmp.eq.s32.totalorder %s9, 0
    %p92 = por %p90, %p91
    %p93 = scmp.ne.s32.totalorder %s85, %s87
    %p94 = scmp.eq.s32.totalorder %s14, 1
    %p95 = por %p93, %p94
    %p96 = scmp.ne.s32.totalorder %s87, %s88
    %p97 = scmp.eq.s32.totalorder %s14, 0
    %p98 = por %p96, %p97
    %p99 = scmp.ne.s32.totalorder %s87, %s88
    %p100 = scmp.eq.s32.totalorder %s15, 1
    %p101 = por %p99, %p100
    %p103 = scmp.ne.s32.totalorder %s88, %s102
    %p104 = scmp.eq.s32.totalorder %s15, 0
    %p105 = por %p103, %p104
    %s107 = sadd.s32 %s106, 1
    %p110 = scmp.eq.s32.totalorder %s9, 1
    %p111 = scmp.ne.s32.totalorder %s106, %s108
    %p112 = scmp.eq.s32.totalorder %s9, 0
    %p113 = por %p111, %p112
    %p114 = scmp.ne.s32.totalorder %s106, %s108
    %p115 = scmp.eq.s32.totalorder %s14, 1
    %p116 = por %p114, %p115
    %p117 = scmp.ne.s32.totalorder %s108, %s109
    %p118 = scmp.eq.s32.totalorder %s14, 0
    %p119 = por %p117, %p118
    %p120 = scmp.ne.s32.totalorder %s108, %s109
    %p121 = scmp.eq.s32.totalorder %s15, 1
    %p122 = por %p120, %p121
    %p124 = scmp.ne.s32.totalorder %s109, %s123
    %p125 = scmp.eq.s32.totalorder %s15, 0
    %p126 = por %p124, %p125
    %p127 = scmp.le.s32.totalorder 1, %s9
    %p128 = scmp.lt.s32.totalorder %s9, 3
    %p129 = pnand %p127, %p128
    %p130 = pneg %p129
    // Predicated region
    $region9: #{i2c_block_v1.2} parent=5 // pred_check
      _
    $region10: #{i2c_block_v1.2} parent=5 // pred_check_branch
      %132 = sbr.rel (%p129) target = $region12
    $region11: #{i2c_block_v1.2} parent=5 // pred_region
      %s133 = ssub.s32 %s9, 1
      // Predicated region
      $region13: #{i2c_block_v1.2} parent=11 // pred_check
        %p134 = pneg %p98
      $region14: #{i2c_block_v1.2} parent=11 // pred_check_branch
        %136 = sbr.rel (%p134) target = $region16
      $region15: #{i2c_block_v1.2} parent=11 // pred_region
        _
      $region16: #{i2c_block_v1.2} parent=11 // pred_fallthru
        _
    $region12: #{i2c_block_v1.2} parent=5 // pred_fallthru
      _
    %p137 = scmp.lt.s32.totalorder %s9, 2
    // Predicated region
    $region17: #{i2c_block_v1.2} parent=5 // pred_check
      %p138 = pneg %p137
    $region18: #{i2c_block_v1.2} parent=5 // pred_check_branch
      %140 = sbr.rel (%p138) target = $region20
    $region19: #{i2c_block_v1.2} parent=5 // pred_region
      // Predicated region
      $region21: #{i2c_block_v1.2} parent=19 // pred_check
        %p141 = pneg %p43
      $region22: #{i2c_block_v1.2} parent=19 // pred_check_branch
        %143 = sbr.rel (%p141) target = $region24
      $region23: #{i2c_block_v1.2} parent=19 // pred_region
        %p144 = scmp.lt.s32.totalorder %s16, 1
        %s145 = scalar_select %p144, %s16, 1
        %p146 = scmp.lt.s32.totalorder %s17, 0
        %s147 = scalar_select %p146, %s17, 0
        %s148 = smul.addr %s145, 3
        %s149 = sadd.s32 %s147, %s148
        %s150 = smul.addr %s149, 8
        %s151 = scalar_lea.vmem %s0, %s150
      $region24: #{i2c_block_v1.2} parent=19 // pred_fallthru
        _
      // Predicated region
      $region25: #{i2c_block_v1.2} parent=19 // pred_check
        %p152 = pneg %p71
      $region26: #{i2c_block_v1.2} parent=19 // pred_check_branch
        %154 = sbr.rel (%p152) target = $region28
      $region27: #{i2c_block_v1.2} parent=19 // pred_region
        %p155 = scmp.lt.s32.totalorder %s16, 1
        %s156 = scalar_select %p155, %s16, 1
        %p157 = scmp.lt.s32.totalorder %s17, 0
        %s158 = scalar_select %p157, %s17, 0
        %s159 = smul.addr %s158, 3
        %s160 = smul.addr %s156, 3
        %s161 = sadd.s32 %s159, %s160
        %s162 = smul.addr %s161, 8
        %s163 = scalar_lea.vmem %s1, %s162
      $region28: #{i2c_block_v1.2} parent=19 // pred_fallthru
        _
    $region20: #{i2c_block_v1.2} parent=5 // pred_fallthru
      _
    %p164 = scmp.le.s32.totalorder 1, %s9
    %p165 = scmp.lt.s32.totalorder %s9, 3
    %p166 = pnand %p164, %p165
    %p167 = pneg %p166
    // Predicated region
    $region29: #{i2c_block_v1.2} parent=5 // pred_check
      _
    $region30: #{i2c_block_v1.2} parent=5 // pred_check_branch
      %169 = sbr.rel (%p166) target = $region32
    $region31: #{i2c_block_v1.2} parent=5 // pred_region
      %s170 = ssub.s32 %s9, 1
      %p171 = scmp.lt.s32.totalorder %s18, 1
      %s172 = scalar_select %p171, %s18, 1
      %p173 = scmp.lt.s32.totalorder %s19, 0
      %s174 = scalar_select %p173, %s19, 0
      %s175 = smul.addr %s172, 3
      %s176 = sadd.s32 %s174, %s175
      %s177 = smul.addr %s176, 8
      %s178 = scalar_lea.vmem %s0, %s177
      %p179 = pneg %p49
      %p180 = pneg %p46
      %p181 = scmp.lt.s32.totalorder %s18, 1
      %s182 = scalar_select %p181, %s18, 1
      %p183 = scmp.lt.s32.totalorder %s19, 0
      %s184 = scalar_select %p183, %s19, 0
      %s185 = smul.addr %s184, 3
      %s186 = smul.addr %s182, 3
      %s187 = sadd.s32 %s185, %s186
      %s188 = smul.addr %s187, 8
      %s189 = scalar_lea.vmem %s1, %s188
      %p190 = pneg %p77
      %p191 = pneg %p74
      %p192 = pneg %p98
      %p193 = pneg %p95
      %p194 = pneg %p119
      %p195 = pneg %p116
      %p196 = scmp.lt.s32.totalorder %s18, 1
      %s197 = scalar_select %p196, %s18, 1
      %p198 = scmp.lt.s32.totalorder %s19, 0
      %s199 = scalar_select %p198, %s19, 0
      %s200 = smul.addr %s197, 3
      %s201 = sadd.s32 %s199, %s200
      %s202 = smul.addr %s201, 8
      %s203 = scalar_lea.vmem %s0, %s202
      %p204 = scmp.lt.s32.totalorder %s18, 1
      %s205 = scalar_select %p204, %s18, 1
      %p206 = scmp.lt.s32.totalorder %s19, 0
      %s207 = scalar_select %p206, %s19, 0
      %s208 = smul.addr %s207, 3
      %s209 = smul.addr %s205, 3
      %s210 = sadd.s32 %s208, %s209
      %s211 = smul.addr %s210, 8
      %s212 = scalar_lea.vmem %s1, %s211
      %p213 = scmp.eq.s32.totalorder %s18, 0
      %p214 = scmp.eq.s32.totalorder %s19, 0
      %p215 = pnand %p213, %p214
      %p216 = pneg %p215
      // Predicated region
      $region33: #{i2c_block_v1.2} parent=31 // pred_check
        _
      $region34: #{i2c_block_v1.2} parent=31 // pred_check_branch
        %218 = sbr.rel (%p215) target = $region36
      $region35: #{i2c_block_v1.2} parent=31 // pred_region
        %vm219 = vcmask 15360
        %220 = vst.msk [vmem:[%s3] sm:$0xff] %vm219, 0.0
        %221 = vst.msk [vmem:[%s3 + $0x8] sm:$0xff] %vm219, 0.0
        %222 = vst.msk [vmem:[%s3 + $0x10] sm:$0xff] %vm219, 0.0
      $region36: #{i2c_block_v1.2} parent=31 // pred_fallthru
        _
      %v223 = vld [vmem:[%s203] sm:$0xff]
      %v224 = vld [vmem:[%s203 + $0x8] sm:$0xff]
      %v225 = vld [vmem:[%s203 + $0x10] sm:$0xf]
      %v226 = vld [vmem:[%s212] sm:$0xff]
      %v227 = vld [vmem:[%s212 + $0x8] sm:$0xff]
      %v228 = vld [vmem:[%s212 + $0x10] sm:$0xf]
      %232 = vrot.lane.b32.xlu0 %v223, 1
      %v233 = vpop.permute.xlu0 %232
      %234 = vrot.lane.b32.xlu0 %v224, 1
      %v235 = vpop.permute.xlu0 %234
      %236 = vrot.lane.b32.xlu0 %v225, 1
      %v237 = vpop.permute.xlu0 %236
      %244 = vrot.lane.b32.xlu0 %v226, 16
      %v245 = vpop.permute.xlu0 %244
      %246 = vrot.lane.b32.xlu0 %v227, 16
      %v247 = vpop.permute.xlu0 %246
      %248 = vrot.lane.b32.xlu0 %v228, 16
      %v249 = vpop.permute.xlu0 %248
      %vm253 = vcmask 7168
      %v254 = vsel %vm253, %v226, %v233
      %v255 = vsel %vm253, %v227, %v235
      %v256 = vsel %vm253, %v228, %v237
      %vm257 = vcmask 138240
      %v258 = vsel %vm257, %v254, %v245
      %v259 = vsel %vm257, %v255, %v247
      %v260 = vsel %vm257, %v256, %v249
      %v261 = vld [vmem:[%s2] sm:$0xff]
      %v262 = vld [vmem:[%s2 + $0x8] sm:$0xff]
      %v263 = vld [vmem:[%s2 + $0x10] sm:$0xff]
      %s264 = scalar_lea.vmem %s2, 24
      %v265 = vld [vmem:[%s264] sm:$0xff]
      %v266 = vld [vmem:[%s264 + $0x8] sm:$0xff]
      %v267 = vld [vmem:[%s264 + $0x10] sm:$0xff]
      %271 = vrot.lane.b32.xlu0 %v258, 127
      %v272 = vpop.permute.xlu0 %271
      %273 = vrot.lane.b32.xlu0 %v259, 127
      %v274 = vpop.permute.xlu0 %273
      %275 = vrot.lane.b32.xlu0 %v260, 127
      %v276 = vpop.permute.xlu0 %275
      %vm279 = vcmask 162816
      %v281 = vsel %vm279, %v265, 0
      %v284 = vsel %vm279, %v266, 0
      %v287 = vsel %vm279, %v267, 0
      %vm289 = vcmask 1043456
      %v290 = vsel %vm289, %v276, 0
      %292 = vmatprep.subr.mxu0 0.0
      %293 = vmatpush1.msra.mxu0 %v272
      %294 = vmatprep.subr.mxu0 0.0
      %295 = vmatpush1.msra.mxu0 %v274
      %296 = vmatprep.subr.mxu0 0.0
      %297 = vmatpush1.msra.mxu0 %v290
      %298 = vmatprep.subr.mxu0 0.0
      %299 = vmatpush1.msra.mxu0 0.0
      %300 = vmatprep.subr.mxu0 0.0
      %301 = vmatpush1.msra.mxu0 0.0
      %302 = vmatprep.subr.mxu0 0.0
      %303 = vmatpush1.msra.mxu0 0.0
      %304 = vmatprep.subr.mxu0 0.0
      %305 = vmatpush1.msra.mxu0 0.0
      %306 = vmatprep.subr.mxu0 0.0
      %307 = vmatpush1.msra.mxu0 0.0
      %308 = vmatprep.subr.mxu0 0.0
      %309 = vmatpush1.msra.mxu0 0.0
      %310 = vmatprep.subr.mxu0 0.0
      %311 = vmatpush1.msra.mxu0 0.0
      %312 = vmatprep.subr.mxu0 0.0
      %313 = vmatpush1.msra.mxu0 0.0
      %314 = vmatprep.subr.mxu0 0.0
      %315 = vmatpush1.msra.mxu0 0.0
      %316 = vmatprep.subr.mxu0 0.0
      %317 = vmatpush1.msra.mxu0 0.0
      %318 = vmatprep.subr.mxu0 0.0
      %319 = vmatpush1.msra.mxu0 0.0
      %320 = vmatprep.subr.mxu0 0.0
      %321 = vmatpush1.msra.mxu0 0.0
      %322 = vmatprep.subr.mxu0 0.0
      %323 = vmatpush1.msra.mxu0 0.0
      %324 = vmatprep.subr.mxu0 0.0
      %325 = vmatpush1.msra.mxu0 0.0
      %326 = vmatprep.subr.mxu0 0.0
      %327 = vmatpush1.msra.mxu0 0.0
      %328 = vmatprep.subr.mxu0 0.0
      %329 = vmatpush1.msra.mxu0 0.0
      %330 = vmatprep.subr.mxu0 0.0
      %331 = vmatpush1.msra.mxu0 0.0
      %332 = vmatprep.subr.mxu0 0.0
      %333 = vmatpush1.msra.mxu0 0.0
      %334 = vmatprep.subr.mxu0 0.0
      %335 = vmatpush1.msra.mxu0 0.0
      %336 = vmatprep.subr.mxu0 0.0
      %337 = vmatpush1.msra.mxu0 0.0
      %338 = vmatprep.subr.mxu0 0.0
      %339 = vmatpush1.msra.mxu0 0.0
      %340 = vmatprep.subr.mxu0 0.0
      %341 = vmatpush1.msra.mxu0 0.0
      %342 = vmatprep.subr.mxu0 0.0
      %343 = vmatpush1.msra.mxu0 0.0
      %344 = vmatprep.subr.mxu0 0.0
      %345 = vmatpush1.msra.mxu0 0.0
      %346 = vmatprep.subr.mxu0 0.0
      %347 = vmatpush1.msra.mxu0 0.0
      %348 = vmatprep.subr.mxu0 0.0
      %349 = vmatpush1.msra.mxu0 0.0
      %350 = vmatprep.subr.mxu0 0.0
      %351 = vmatpush1.msra.mxu0 0.0
      %352 = vmatprep.subr.mxu0 0.0
      %353 = vmatpush1.msra.mxu0 0.0
      %354 = vmatprep.subr.mxu0 0.0
      %355 = vmatpush1.msra.mxu0 0.0
      %356 = vmatprep.mubr.f32.mxu0 0.0
      %357 = vmatmul.mubr.f32.gmra.mrb[0].mxu0 %v281
      %v358 = vpop.f32.mrb[0].mxu0
      %v359 = vadd.f32 0.0, %v358
      %v360 = vpop.f32.mrb[0].mxu0
      %361 = vmatprep.mubr.f32.mxu0 0.0
      %362 = vmatmul.mubr.f32.gmra.mrb[0].mxu0 %v284
      %v363 = vpop.f32.mrb[0].mxu0
      %v364 = vadd.f32 0.0, %v363
      %v365 = vpop.f32.mrb[0].mxu0
      %366 = vmatprep.mubr.f32.mxu0 0.0
      %367 = vmatmul.mubr.f32.gmra.mrb[0].mxu0 %v287
      %v368 = vpop.f32.mrb[0].mxu0
      %v369 = vadd.f32 0.0, %v368
      %v370 = vpop.f32.mrb[0].mxu0
      %371 = vdwg.mxu0
      %v373 = vsel %vm279, %v261, 0
      %v376 = vsel %vm279, %v262, 0
      %v379 = vsel %vm279, %v263, 0
      %v381 = vsel %vm289, %v260, 0
      %383 = vmatprep.subr.mxu0 0.0
      %384 = vmatpush1.msra.mxu0 %v258
      %385 = vmatprep.subr.mxu0 0.0
      %386 = vmatpush1.msra.mxu0 %v259
      %387 = vmatprep.subr.mxu0 0.0
      %388 = vmatpush1.msra.mxu0 %v381
      %389 = vmatprep.subr.mxu0 0.0
      %390 = vmatpush1.msra.mxu0 0.0
      %391 = vmatprep.subr.mxu0 0.0
      %392 = vmatpush1.msra.mxu0 0.0
      %393 = vmatprep.subr.mxu0 0.0
      %394 = vmatpush1.msra.mxu0 0.0
      %395 = vmatprep.subr.mxu0 0.0
      %396 = vmatpush1.msra.mxu0 0.0
      %397 = vmatprep.subr.mxu0 0.0
      %398 = vmatpush1.msra.mxu0 0.0
      %399 = vmatprep.subr.mxu0 0.0
      %400 = vmatpush1.msra.mxu0 0.0
      %401 = vmatprep.subr.mxu0 0.0
      %402 = vmatpush1.msra.mxu0 0.0
      %403 = vmatprep.subr.mxu0 0.0
      %404 = vmatpush1.msra.mxu0 0.0
      %405 = vmatprep.subr.mxu0 0.0
      %406 = vmatpush1.msra.mxu0 0.0
      %407 = vmatprep.subr.mxu0 0.0
      %408 = vmatpush1.msra.mxu0 0.0
      %409 = vmatprep.subr.mxu0 0.0
      %410 = vmatpush1.msra.mxu0 0.0
      %411 = vmatprep.subr.mxu0 0.0
      %412 = vmatpush1.msra.mxu0 0.0
      %413 = vmatprep.subr.mxu0 0.0
      %414 = vmatpush1.msra.mxu0 0.0
      %415 = vmatprep.subr.mxu0 0.0
      %416 = vmatpush1.msra.mxu0 0.0
      %417 = vmatprep.subr.mxu0 0.0
      %418 = vmatpush1.msra.mxu0 0.0
      %419 = vmatprep.subr.mxu0 0.0
      %420 = vmatpush1.msra.mxu0 0.0
      %421 = vmatprep.subr.mxu0 0.0
      %422 = vmatpush1.msra.mxu0 0.0
      %423 = vmatprep.subr.mxu0 0.0
      %424 = vmatpush1.msra.mxu0 0.0
      %425 = vmatprep.subr.mxu0 0.0
      %426 = vmatpush1.msra.mxu0 0.0
      %427 = vmatprep.subr.mxu0 0.0
      %428 = vmatpush1.msra.mxu0 0.0
      %429 = vmatprep.subr.mxu0 0.0
      %430 = vmatpush1.msra.mxu0 0.0
      %431 = vmatprep.subr.mxu0 0.0
      %432 = vmatpush1.msra.mxu0 0.0
      %433 = vmatprep.subr.mxu0 0.0
      %434 = vmatpush1.msra.mxu0 0.0
      %435 = vmatprep.subr.mxu0 0.0
      %436 = vmatpush1.msra.mxu0 0.0
      %437 = vmatprep.subr.mxu0 0.0
      %438 = vmatpush1.msra.mxu0 0.0
      %439 = vmatprep.subr.mxu0 0.0
      %440 = vmatpush1.msra.mxu0 0.0
      %441 = vmatprep.subr.mxu0 0.0
      %442 = vmatpush1.msra.mxu0 0.0
      %443 = vmatprep.subr.mxu0 0.0
      %444 = vmatpush1.msra.mxu0 0.0
      %445 = vmatprep.subr.mxu0 0.0
      %446 = vmatpush1.msra.mxu0 0.0
      %447 = vmatprep.mubr.f32.mxu0 0.0
      %448 = vmatmul.mubr.f32.gmra.mrb[0].mxu0 %v373
      %v449 = vpop.f32.mrb[0].mxu0
      %v450 = vadd.f32 %v359, %v449
      %v451 = vpop.f32.mrb[0].mxu0
      %452 = vmatprep.mubr.f32.mxu0 0.0
      %453 = vmatmul.mubr.f32.gmra.mrb[0].mxu0 %v376
      %v454 = vpop.f32.mrb[0].mxu0
      %v455 = vadd.f32 %v364, %v454
      %v456 = vpop.f32.mrb[0].mxu0
      %457 = vmatprep.mubr.f32.mxu0 0.0
      %458 = vmatmul.mubr.f32.gmra.mrb[0].mxu0 %v379
      %v459 = vpop.f32.mrb[0].mxu0
      %v460 = vadd.f32 %v369, %v459
      %v461 = vpop.f32.mrb[0].mxu0
      %462 = vdwg.mxu0
      %s463 = scalar_lea.vmem %s2, 48
      %v464 = vld [vmem:[%s463] sm:$0xff]
      %v465 = vld [vmem:[%s463 + $0x8] sm:$0xff]
      %v466 = vld [vmem:[%s463 + $0x10] sm:$0xff]
      %467 = vrot.lane.b32.xlu0 %v258, 126
      %v468 = vpop.permute.xlu0 %467
      %469 = vrot.lane.b32.xlu0 %v259, 126
      %v470 = vpop.permute.xlu0 %469
      %471 = vrot.lane.b32.xlu0 %v260, 126
      %v472 = vpop.permute.xlu0 %471
      %v476 = vsel %vm279, %v464, 0
      %v479 = vsel %vm279, %v465, 0
      %v482 = vsel %vm279, %v466, 0
      %v484 = vsel %vm289, %v472, 0
      %486 = vmatprep.subr.mxu0 0.0
      %487 = vmatpush1.msra.mxu0 %v468
      %488 = vmatprep.subr.mxu0 0.0
      %489 = vmatpush1.msra.mxu0 %v470
      %490 = vmatprep.subr.mxu0 0.0
      %491 = vmatpush1.msra.mxu0 %v484
      %492 = vmatprep.subr.mxu0 0.0
      %493 = vmatpush1.msra.mxu0 0.0
      %494 = vmatprep.subr.mxu0 0.0
      %495 = vmatpush1.msra.mxu0 0.0
      %496 = vmatprep.subr.mxu0 0.0
      %497 = vmatpush1.msra.mxu0 0.0
      %498 = vmatprep.subr.mxu0 0.0
      %499 = vmatpush1.msra.mxu0 0.0
      %500 = vmatprep.subr.mxu0 0.0
      %501 = vmatpush1.msra.mxu0 0.0
      %502 = vmatprep.subr.mxu0 0.0
      %503 = vmatpush1.msra.mxu0 0.0
      %504 = vmatprep.subr.mxu0 0.0
      %505 = vmatpush1.msra.mxu0 0.0
      %506 = vmatprep.subr.mxu0 0.0
      %507 = vmatpush1.msra.mxu0 0.0
      %508 = vmatprep.subr.mxu0 0.0
      %509 = vmatpush1.msra.mxu0 0.0
      %510 = vmatprep.subr.mxu0 0.0
      %511 = vmatpush1.msra.mxu0 0.0
      %512 = vmatprep.subr.mxu0 0.0
      %513 = vmatpush1.msra.mxu0 0.0
      %514 = vmatprep.subr.mxu0 0.0
      %515 = vmatpush1.msra.mxu0 0.0
      %516 = vmatprep.subr.mxu0 0.0
      %517 = vmatpush1.msra.mxu0 0.0
      %518 = vmatprep.subr.mxu0 0.0
      %519 = vmatpush1.msra.mxu0 0.0
      %520 = vmatprep.subr.mxu0 0.0
      %521 = vmatpush1.msra.mxu0 0.0
      %522 = vmatprep.subr.mxu0 0.0
      %523 = vmatpush1.msra.mxu0 0.0
      %524 = vmatprep.subr.mxu0 0.0
      %525 = vmatpush1.msra.mxu0 0.0
      %526 = vmatprep.subr.mxu0 0.0
      %527 = vmatpush1.msra.mxu0 0.0
      %528 = vmatprep.subr.mxu0 0.0
      %529 = vmatpush1.msra.mxu0 0.0
      %530 = vmatprep.subr.mxu0 0.0
      %531 = vmatpush1.msra.mxu0 0.0
      %532 = vmatprep.subr.mxu0 0.0
      %533 = vmatpush1.msra.mxu0 0.0
      %534 = vmatprep.subr.mxu0 0.0
      %535 = vmatpush1.msra.mxu0 0.0
      %536 = vmatprep.subr.mxu0 0.0
      %537 = vmatpush1.msra.mxu0 0.0
      %538 = vmatprep.subr.mxu0 0.0
      %539 = vmatpush1.msra.mxu0 0.0
      %540 = vmatprep.subr.mxu0 0.0
      %541 = vmatpush1.msra.mxu0 0.0
      %542 = vmatprep.subr.mxu0 0.0
      %543 = vmatpush1.msra.mxu0 0.0
      %544 = vmatprep.subr.mxu0 0.0
      %545 = vmatpush1.msra.mxu0 0.0
      %546 = vmatprep.subr.mxu0 0.0
      %547 = vmatpush1.msra.mxu0 0.0
      %548 = vmatprep.subr.mxu0 0.0
      %549 = vmatpush1.msra.mxu0 0.0
      %550 = vmatprep.mubr.f32.mxu0 0.0
      %551 = vmatmul.mubr.f32.gmra.mrb[0].mxu0 %v476
      %v552 = vpop.f32.mrb[0].mxu0
      %v553 = vadd.f32 0.0, %v552
      %v554 = vpop.f32.mrb[0].mxu0
      %555 = vmatprep.mubr.f32.mxu0 0.0
      %556 = vmatmul.mubr.f32.gmra.mrb[0].mxu0 %v479
      %v557 = vpop.f32.mrb[0].mxu0
      %v558 = vadd.f32 0.0, %v557
      %v559 = vpop.f32.mrb[0].mxu0
      %560 = vmatprep.mubr.f32.mxu0 0.0
      %561 = vmatmul.mubr.f32.gmra.mrb[0].mxu0 %v482
      %v562 = vpop.f32.mrb[0].mxu0
      %v563 = vadd.f32 0.0, %v562
      %v564 = vpop.f32.mrb[0].mxu0
      %565 = vdwg.mxu0
      %v566 = vadd.f32 %v450, %v553
      %v567 = vadd.f32 %v455, %v558
      %v568 = vadd.f32 %v460, %v563
      %v569 = vld [vmem:[%s3] sm:$0xff]
      %v570 = vld [vmem:[%s3 + $0x8] sm:$0xff]
      %v571 = vld [vmem:[%s3 + $0x10] sm:$0xff]
      %vm572 = vcmask 130048
      %v573 = vsel %vm572, %v566, 0.0
      %574 = vadd.xlane.f32.xlu0 %v573
      %v575 = vpop.xlane.xlu0 %574
      %v576 = vsel %vm572, %v567, 0.0
      %577 = vadd.xlane.f32.xlu0 %v576
      %v578 = vpop.xlane.xlu0 %577
      %v579 = vsel %vm572, %v568, 0.0
      %580 = vadd.xlane.f32.xlu0 %v579
      %v581 = vpop.xlane.xlu0 %580
      %v582 = vmul.f32 %v566, %v566
      %v583 = vmul.f32 %v567, %v567
      %v584 = vmul.f32 %v568, %v568
      %v585 = vsel %vm572, %v582, 0.0
      %586 = vadd.xlane.f32.xlu0 %v585
      %v587 = vpop.xlane.xlu0 %586
      %v588 = vsel %vm572, %v583, 0.0
      %589 = vadd.xlane.f32.xlu0 %v588
      %v590 = vpop.xlane.xlu0 %589
      %v591 = vsel %vm572, %v584, 0.0
      %592 = vadd.xlane.f32.xlu0 %v591
      %v593 = vpop.xlane.xlu0 %592
      %v594 = vsel %vm253, %v575, %v587
      %v595 = vsel %vm253, %v578, %v590
      %v596 = vsel %vm253, %v581, %v593
      %v597 = vadd.f32 %v569, %v594
      %v598 = vadd.f32 %v570, %v595
      %v599 = vadd.f32 %v571, %v596
      %vm600 = vcmask 15360
      %601 = vst.msk [vmem:[%s3] sm:$0xff] %vm600, %v597
      %602 = vst.msk [vmem:[%s3 + $0x8] sm:$0xff] %vm600, %v598
      %603 = vst.msk [vmem:[%s3 + $0x10] sm:$0xff] %vm600, %v599
      // Predicated region
      $region37: #{i2c_block_v1.2} parent=31 // pred_check
        %p604 = pneg %p116
      $region38: #{i2c_block_v1.2} parent=31 // pred_check_branch
        %606 = sbr.rel (%p604) target = $region40
      $region39: #{i2c_block_v1.2} parent=31 // pred_region
        _
      $region40: #{i2c_block_v1.2} parent=31 // pred_fallthru
        _
      // Predicated region
      $region41: #{i2c_block_v1.2} parent=31 // pred_check
        %p607 = pneg %p116
      $region42: #{i2c_block_v1.2} parent=31 // pred_check_branch
        %609 = sbr.rel (%p607) target = $region44
      $region43: #{i2c_block_v1.2} parent=31 // pred_region
        _
      $region44: #{i2c_block_v1.2} parent=31 // pred_fallthru
        _
    $region32: #{i2c_block_v1.2} parent=5 // pred_fallthru
      _
    %p610 = scmp.le.s32.totalorder 2, %s9
    // Predicated region
    $region45: #{i2c_block_v1.2} parent=5 // pred_check
      %p611 = pneg %p610
    $region46: #{i2c_block_v1.2} parent=5 // pred_check_branch
      %613 = sbr.rel (%p611) target = $region48
    $region47: #{i2c_block_v1.2} parent=5 // pred_region
      %s614 = ssub.s32 %s9, 2
    $region48: #{i2c_block_v1.2} parent=5 // pred_fallthru
      _
  $region6: #{i2c_block_v1.2} parent=0 // loop_footer
    %s13 = sadd.s32 1, %s9
  $region7: #{i2c_block_v1.2} parent=0 // loop_footer_branch
    %8 = sbr.rel target = $region3
  $region8: #{i2c_block_v1.2} parent=0 // loop_exit
    _

// kernel: i2c_block_v1.3
$region0: #{i2c_block_v1.3}
  #allocation0 [shape = 'u32[]', space=smem, size = 0x4, offset = 0x4, fixed_abs, tag = 'smem constant byte address 0x4 - core index']
  #allocation1 [shape = 'u32[144,128]{1,0:T(1,128)}', space=vmem, size = 0x12000, scoped, tag = 'internal scratch']
  %s0 = inlined_call_operand.vmem [shape: f32[2,20,16], index: 0, kind: input, shape index: {}]
  %s1 = inlined_call_operand.vmem [shape: f32[2,1,20,2], index: 1, kind: input, shape index: {}]
  %s2 = inlined_call_operand.vmem [shape: f32[3,24,20], index: 2, kind: input, shape index: {}]
  %s3 = inlined_call_operand.vmem [shape: f32[24,2], index: 3, kind: input, shape index: {}]
  %s4 = inlined_call_operand.vmem [shape: f32[2,22,16], index: 4, kind: output, shape index: {}]
  %s5 = sld [smem:[#allocation0]]
  $region49: #{i2c_block_v1.3} parent=0
    _
  %s7 = ssub.s32 1, %s5
  %s8 = scalar_select 0, %s7, %s5
  loop: start=0, step=1, limit=4
  $region2: #{i2c_block_v1.3} parent=0 // loop_pre_header
    _
  $region3: #{i2c_block_v1.3} parent=0 // loop_header
    %s10 = sphi 0, %s14
    %p11 = scmp.ge.s32.totalorder %s10, 4
    %s17 = sphi 0, %s29
    %s18 = sphi 0, %s25
    %s19 = sphi 0, %s17
    %s20 = sphi 0, %s18
    %s21 = sphi 0, %s19
    %s22 = sphi 0, %s20
    %s34 = sphi 0, %s36
    %s37 = sphi 0, %s34
    %s38 = sphi 0, %s37
    %s54 = sphi 0, %s38
    %s62 = sphi 0, %s64
    %s65 = sphi 0, %s62
    %s66 = sphi 0, %s65
    %s82 = sphi 0, %s66
    %s86 = sphi 0, %s86
    %s88 = sphi 0, %s86
    %s89 = sphi 0, %s88
    %s103 = sphi 0, %s89
    %s107 = sphi 0, %s107
    %s109 = sphi 0, %s107
    %s110 = sphi 0, %s109
    %s124 = sphi 0, %s110
    %s132 = sphi 0, %s134
    %s135 = sphi 0, %s132
    %s136 = sphi 0, %s135
    %s152 = sphi 0, %s136
  $region4: #{i2c_block_v1.3} parent=0 // loop_header_branch
    %13 = sbr.rel (%p11) target = $region8
  $region5: #{i2c_block_v1.3} parent=0 // loop_body
    %s15 = ssub.s32 %s10, 1
    %s16 = ssub.s32 %s10, 2
    %s23 = sadd.s32 1, %s18
    %p24 = scmp.ge.s32.totalorder %s23, 1
    %s25 = scalar_select %p24, 0, %s23
    %s26 = sadd.s32 1, %s17
    %s27 = scalar_select %p24, %s26, %s17
    %p28 = scmp.ge.s32.totalorder %s27, 2
    %s29 = scalar_select %p28, 0, %s27
    %s30 = ssub.s32 %s17, %s29
    %s31 = ssub.s32 %s18, %s25
    %s32 = sor.u32 %s30, %s31
    %p33 = scmp.eq.s32.totalorder %s32, 0
    %s35 = sadd.s32 %s34, 1
    %s36 = scalar_select %p33, %s34, %s35
    %p39 = pneg %p33
    %p40 = scmp.eq.s32.totalorder %s10, 1
    %p41 = por %p39, %p40
    %p42 = scmp.ne.s32.totalorder %s34, %s37
    %p43 = scmp.eq.s32.totalorder %s10, 0
    %p44 = por %p42, %p43
    %p45 = scmp.ne.s32.totalorder %s34, %s37
    %p46 = scmp.eq.s32.totalorder %s15, 1
    %p47 = por %p45, %p46
    %p48 = scmp.ne.s32.totalorder %s37, %s38
    %p49 = scmp.eq.s32.totalorder %s15, 0
    %p50 = por %p48, %p49
    %p51 = scmp.ne.s32.totalorder %s37, %s38
    %p52 = scmp.eq.s32.totalorder %s16, 1
    %p53 = por %p51, %p52
    %p55 = scmp.ne.s32.totalorder %s38, %s54
    %p56 = scmp.eq.s32.totalorder %s16, 0
    %p57 = por %p55, %p56
    %s58 = ssub.s32 %s17, %s29
    %s59 = ssub.s32 %s18, %s25
    %s60 = sor.u32 %s58, %s59
    %p61 = scmp.eq.s32.totalorder %s60, 0
    %s63 = sadd.s32 %s62, 1
    %s64 = scalar_select %p61, %s62, %s63
    %p67 = pneg %p61
    %p68 = scmp.eq.s32.totalorder %s10, 1
    %p69 = por %p67, %p68
    %p70 = scmp.ne.s32.totalorder %s62, %s65
    %p71 = scmp.eq.s32.totalorder %s10, 0
    %p72 = por %p70, %p71
    %p73 = scmp.ne.s32.totalorder %s62, %s65
    %p74 = scmp.eq.s32.totalorder %s15, 1
    %p75 = por %p73, %p74
    %p76 = scmp.ne.s32.totalorder %s65, %s66
    %p77 = scmp.eq.s32.totalorder %s15, 0
    %p78 = por %p76, %p77
    %p79 = scmp.ne.s32.totalorder %s65, %s66
    %p80 = scmp.eq.s32.totalorder %s16, 1
    %p81 = por %p79, %p80
    %p83 = scmp.ne.s32.totalorder %s66, %s82
    %p84 = scmp.eq.s32.totalorder %s16, 0
    %p85 = por %p83, %p84
    %s87 = sadd.s32 %s86, 1
    %p90 = scmp.eq.s32.totalorder %s10, 1
    %p91 = scmp.ne.s32.totalorder %s86, %s88
    %p92 = scmp.eq.s32.totalorder %s10, 0
    %p93 = por %p91, %p92
    %p94 = scmp.ne.s32.totalorder %s86, %s88
    %p95 = scmp.eq.s32.totalorder %s15, 1
    %p96 = por %p94, %p95
    %p97 = scmp.ne.s32.totalorder %s88, %s89
    %p98 = scmp.eq.s32.totalorder %s15, 0
    %p99 = por %p97, %p98
    %p100 = scmp.ne.s32.totalorder %s88, %s89
    %p101 = scmp.eq.s32.totalorder %s16, 1
    %p102 = por %p100, %p101
    %p104 = scmp.ne.s32.totalorder %s89, %s103
    %p105 = scmp.eq.s32.totalorder %s16, 0
    %p106 = por %p104, %p105
    %s108 = sadd.s32 %s107, 1
    %p111 = scmp.eq.s32.totalorder %s10, 1
    %p112 = scmp.ne.s32.totalorder %s107, %s109
    %p113 = scmp.eq.s32.totalorder %s10, 0
    %p114 = por %p112, %p113
    %p115 = scmp.ne.s32.totalorder %s107, %s109
    %p116 = scmp.eq.s32.totalorder %s15, 1
    %p117 = por %p115, %p116
    %p118 = scmp.ne.s32.totalorder %s109, %s110
    %p119 = scmp.eq.s32.totalorder %s15, 0
    %p120 = por %p118, %p119
    %p121 = scmp.ne.s32.totalorder %s109, %s110
    %p122 = scmp.eq.s32.totalorder %s16, 1
    %p123 = por %p121, %p122
    %p125 = scmp.ne.s32.totalorder %s110, %s124
    %p126 = scmp.eq.s32.totalorder %s16, 0
    %p127 = por %p125, %p126
    %s128 = ssub.s32 %s17, %s29
    %s129 = ssub.s32 %s18, %s25
    %s130 = sor.u32 %s128, %s129
    %p131 = scmp.eq.s32.totalorder %s130, 0
    %s133 = sadd.s32 %s132, 1
    %s134 = scalar_select %p131, %s132, %s133
    %p137 = pneg %p131
    %p138 = scmp.eq.s32.totalorder %s10, 1
    %p139 = por %p137, %p138
    %p140 = scmp.ne.s32.totalorder %s132, %s135
    %p141 = scmp.eq.s32.totalorder %s10, 0
    %p142 = por %p140, %p141
    %p143 = scmp.ne.s32.totalorder %s132, %s135
    %p144 = scmp.eq.s32.totalorder %s15, 1
    %p145 = por %p143, %p144
    %p146 = scmp.ne.s32.totalorder %s135, %s136
    %p147 = scmp.eq.s32.totalorder %s15, 0
    %p148 = por %p146, %p147
    %p149 = scmp.ne.s32.totalorder %s135, %s136
    %p150 = scmp.eq.s32.totalorder %s16, 1
    %p151 = por %p149, %p150
    %p153 = scmp.ne.s32.totalorder %s136, %s152
    %p154 = scmp.eq.s32.totalorder %s16, 0
    %p155 = por %p153, %p154
    %p156 = scmp.le.s32.totalorder 1, %s10
    %p157 = scmp.lt.s32.totalorder %s10, 3
    %p158 = pnand %p156, %p157
    %p159 = pneg %p158
    // Predicated region
    $region9: #{i2c_block_v1.3} parent=5 // pred_check
      _
    $region10: #{i2c_block_v1.3} parent=5 // pred_check_branch
      %161 = sbr.rel (%p158) target = $region12
    $region11: #{i2c_block_v1.3} parent=5 // pred_region
      %s162 = ssub.s32 %s10, 1
      // Predicated region
      $region13: #{i2c_block_v1.3} parent=11 // pred_check
        %p163 = pneg %p99
      $region14: #{i2c_block_v1.3} parent=11 // pred_check_branch
        %165 = sbr.rel (%p163) target = $region16
      $region15: #{i2c_block_v1.3} parent=11 // pred_region
        _
      $region16: #{i2c_block_v1.3} parent=11 // pred_fallthru
        _
      // Predicated region
      $region17: #{i2c_block_v1.3} parent=11 // pred_check
        %p166 = pneg %p120
      $region18: #{i2c_block_v1.3} parent=11 // pred_check_branch
        %168 = sbr.rel (%p166) target = $region20
      $region19: #{i2c_block_v1.3} parent=11 // pred_region
        _
      $region20: #{i2c_block_v1.3} parent=11 // pred_fallthru
        _
    $region12: #{i2c_block_v1.3} parent=5 // pred_fallthru
      _
    %p169 = scmp.lt.s32.totalorder %s10, 2
    // Predicated region
    $region21: #{i2c_block_v1.3} parent=5 // pred_check
      %p170 = pneg %p169
    $region22: #{i2c_block_v1.3} parent=5 // pred_check_branch
      %172 = sbr.rel (%p170) target = $region24
    $region23: #{i2c_block_v1.3} parent=5 // pred_region
      // Predicated region
      $region25: #{i2c_block_v1.3} parent=23 // pred_check
        %p173 = pneg %p44
      $region26: #{i2c_block_v1.3} parent=23 // pred_check_branch
        %175 = sbr.rel (%p173) target = $region28
      $region27: #{i2c_block_v1.3} parent=23 // pred_region
        %p176 = scmp.lt.s32.totalorder %s17, 1
        %s177 = scalar_select %p176, %s17, 1
        %p178 = scmp.lt.s32.totalorder %s18, 0
        %s179 = scalar_select %p178, %s18, 0
        %s180 = smul.addr %s177, 3
        %s181 = sadd.s32 %s179, %s180
        %s182 = smul.addr %s181, 8
        %s183 = scalar_lea.vmem %s0, %s182
      $region28: #{i2c_block_v1.3} parent=23 // pred_fallthru
        _
      // Predicated region
      $region29: #{i2c_block_v1.3} parent=23 // pred_check
        %p184 = pneg %p72
      $region30: #{i2c_block_v1.3} parent=23 // pred_check_branch
        %186 = sbr.rel (%p184) target = $region32
      $region31: #{i2c_block_v1.3} parent=23 // pred_region
        %p187 = scmp.lt.s32.totalorder %s17, 1
        %s188 = scalar_select %p187, %s17, 1
        %p189 = scmp.lt.s32.totalorder %s18, 0
        %s190 = scalar_select %p189, %s18, 0
        %s191 = smul.addr %s190, 3
        %s192 = smul.addr %s188, 3
        %s193 = sadd.s32 %s191, %s192
        %s194 = smul.addr %s193, 8
        %s195 = scalar_lea.vmem %s1, %s194
      $region32: #{i2c_block_v1.3} parent=23 // pred_fallthru
        _
    $region24: #{i2c_block_v1.3} parent=5 // pred_fallthru
      _
    %p196 = scmp.le.s32.totalorder 1, %s10
    %p197 = scmp.lt.s32.totalorder %s10, 3
    %p198 = pnand %p196, %p197
    %p199 = pneg %p198
    // Predicated region
    $region33: #{i2c_block_v1.3} parent=5 // pred_check
      _
    $region34: #{i2c_block_v1.3} parent=5 // pred_check_branch
      %201 = sbr.rel (%p198) target = $region36
    $region35: #{i2c_block_v1.3} parent=5 // pred_region
      %s202 = ssub.s32 %s10, 1
      %p203 = scmp.lt.s32.totalorder %s19, 1
      %s204 = scalar_select %p203, %s19, 1
      %p205 = scmp.lt.s32.totalorder %s20, 0
      %s206 = scalar_select %p205, %s20, 0
      %s207 = smul.addr %s204, 3
      %s208 = sadd.s32 %s206, %s207
      %s209 = smul.addr %s208, 8
      %s210 = scalar_lea.vmem %s0, %s209
      %p211 = pneg %p50
      %p212 = pneg %p47
      %p213 = scmp.lt.s32.totalorder %s19, 1
      %s214 = scalar_select %p213, %s19, 1
      %p215 = scmp.lt.s32.totalorder %s20, 0
      %s216 = scalar_select %p215, %s20, 0
      %s217 = smul.addr %s216, 3
      %s218 = smul.addr %s214, 3
      %s219 = sadd.s32 %s217, %s218
      %s220 = smul.addr %s219, 8
      %s221 = scalar_lea.vmem %s1, %s220
      %p222 = pneg %p78
      %p223 = pneg %p75
      %p224 = pneg %p99
      %p225 = pneg %p96
      %p226 = pneg %p120
      %p227 = pneg %p117
      %p228 = pneg %p148
      %p229 = pneg %p145
      %p230 = scmp.lt.s32.totalorder %s19, 1
      %s231 = scalar_select %p230, %s19, 1
      %p232 = scmp.lt.s32.totalorder %s20, 0
      %s233 = scalar_select %p232, %s20, 0
      %s234 = smul.addr %s231, 3
      %s235 = sadd.s32 %s233, %s234
      %s236 = smul.addr %s235, 8
      %s237 = scalar_lea.vmem %s4, %s236
      %p238 = scmp.lt.s32.totalorder %s19, 1
      %s239 = scalar_select %p238, %s19, 1
      %p240 = scmp.lt.s32.totalorder %s20, 0
      %s241 = scalar_select %p240, %s20, 0
      %s242 = smul.addr %s239, 3
      %s243 = sadd.s32 %s241, %s242
      %s244 = smul.addr %s243, 8
      %s245 = scalar_lea.vmem %s0, %s244
      %p246 = scmp.lt.s32.totalorder %s19, 1
      %s247 = scalar_select %p246, %s19, 1
      %p248 = scmp.lt.s32.totalorder %s20, 0
      %s249 = scalar_select %p248, %s20, 0
      %s250 = smul.addr %s249, 3
      %s251 = smul.addr %s247, 3
      %s252 = sadd.s32 %s250, %s251
      %s253 = smul.addr %s252, 8
      %s254 = scalar_lea.vmem %s1, %s253
      %p255 = scmp.lt.s32.totalorder %s19, 1
      %s256 = scalar_select %p255, %s19, 1
      %p257 = scmp.lt.s32.totalorder %s20, 0
      %s258 = scalar_select %p257, %s20, 0
      %s259 = smul.addr %s256, 3
      %s260 = sadd.s32 %s258, %s259
      %s261 = smul.addr %s260, 8
      %s262 = scalar_lea.vmem %s4, %s261
      %v263 = vld [vmem:[%s245] sm:$0xff]
      %v264 = vld [vmem:[%s245 + $0x8] sm:$0xff]
      %v265 = vld [vmem:[%s245 + $0x10] sm:$0xf]
      %v266 = vld [vmem:[%s254] sm:$0xff]
      %v267 = vld [vmem:[%s254 + $0x8] sm:$0xff]
      %v268 = vld [vmem:[%s254 + $0x10] sm:$0xf]
      %272 = vrot.lane.b32.xlu0 %v263, 1
      %v273 = vpop.permute.xlu0 %272
      %274 = vrot.lane.b32.xlu0 %v264, 1
      %v275 = vpop.permute.xlu0 %274
      %276 = vrot.lane.b32.xlu0 %v265, 1
      %v277 = vpop.permute.xlu0 %276
      %284 = vrot.lane.b32.xlu0 %v266, 16
      %v285 = vpop.permute.xlu0 %284
      %286 = vrot.lane.b32.xlu0 %v267, 16
      %v287 = vpop.permute.xlu0 %286
      %288 = vrot.lane.b32.xlu0 %v268, 16
      %v289 = vpop.permute.xlu0 %288
      %vm293 = vcmask 7168
      %v294 = vsel %vm293, %v266, %v273
      %v295 = vsel %vm293, %v267, %v275
      %v296 = vsel %vm293, %v268, %v277
      %vm297 = vcmask 138240
      %v298 = vsel %vm297, %v294, %v285
      %v299 = vsel %vm297, %v295, %v287
      %v300 = vsel %vm297, %v296, %v289
      %v301 = vld [vmem:[%s2] sm:$0xff]
      %v302 = vld [vmem:[%s2 + $0x8] sm:$0xff]
      %v303 = vld [vmem:[%s2 + $0x10] sm:$0xff]
      %s304 = scalar_lea.vmem %s2, 24
      %v305 = vld [vmem:[%s304] sm:$0xff]
      %v306 = vld [vmem:[%s304 + $0x8] sm:$0xff]
      %v307 = vld [vmem:[%s304 + $0x10] sm:$0xff]
      %311 = vrot.lane.b32.xlu0 %v298, 127
      %v312 = vpop.permute.xlu0 %311
      %313 = vrot.lane.b32.xlu0 %v299, 127
      %v314 = vpop.permute.xlu0 %313
      %315 = vrot.lane.b32.xlu0 %v300, 127
      %v316 = vpop.permute.xlu0 %315
      %vm319 = vcmask 162816
      %v321 = vsel %vm319, %v305, 0
      %v324 = vsel %vm319, %v306, 0
      %v327 = vsel %vm319, %v307, 0
      %vm329 = vcmask 1043456
      %v330 = vsel %vm329, %v316, 0
      %332 = vmatprep.subr.mxu0 0.0
      %333 = vmatpush1.msra.mxu0 %v312
      %334 = vmatprep.subr.mxu0 0.0
      %335 = vmatpush1.msra.mxu0 %v314
      %336 = vmatprep.subr.mxu0 0.0
      %337 = vmatpush1.msra.mxu0 %v330
      %338 = vmatprep.subr.mxu0 0.0
      %339 = vmatpush1.msra.mxu0 0.0
      %340 = vmatprep.subr.mxu0 0.0
      %341 = vmatpush1.msra.mxu0 0.0
      %342 = vmatprep.subr.mxu0 0.0
      %343 = vmatpush1.msra.mxu0 0.0
      %344 = vmatprep.subr.mxu0 0.0
      %345 = vmatpush1.msra.mxu0 0.0
      %346 = vmatprep.subr.mxu0 0.0
      %347 = vmatpush1.msra.mxu0 0.0
      %348 = vmatprep.subr.mxu0 0.0
      %349 = vmatpush1.msra.mxu0 0.0
      %350 = vmatprep.subr.mxu0 0.0
      %351 = vmatpush1.msra.mxu0 0.0
      %352 = vmatprep.subr.mxu0 0.0
      %353 = vmatpush1.msra.mxu0 0.0
      %354 = vmatprep.subr.mxu0 0.0
      %355 = vmatpush1.msra.mxu0 0.0
      %356 = vmatprep.subr.mxu0 0.0
      %357 = vmatpush1.msra.mxu0 0.0
      %358 = vmatprep.subr.mxu0 0.0
      %359 = vmatpush1.msra.mxu0 0.0
      %360 = vmatprep.subr.mxu0 0.0
      %361 = vmatpush1.msra.mxu0 0.0
      %362 = vmatprep.subr.mxu0 0.0
      %363 = vmatpush1.msra.mxu0 0.0
      %364 = vmatprep.subr.mxu0 0.0
      %365 = vmatpush1.msra.mxu0 0.0
      %366 = vmatprep.subr.mxu0 0.0
      %367 = vmatpush1.msra.mxu0 0.0
      %368 = vmatprep.subr.mxu0 0.0
      %369 = vmatpush1.msra.mxu0 0.0
      %370 = vmatprep.subr.mxu0 0.0
      %371 = vmatpush1.msra.mxu0 0.0
      %372 = vmatprep.subr.mxu0 0.0
      %373 = vmatpush1.msra.mxu0 0.0
      %374 = vmatprep.subr.mxu0 0.0
      %375 = vmatpush1.msra.mxu0 0.0
      %376 = vmatprep.subr.mxu0 0.0
      %377 = vmatpush1.msra.mxu0 0.0
      %378 = vmatprep.subr.mxu0 0.0
      %379 = vmatpush1.msra.mxu0 0.0
      %380 = vmatprep.subr.mxu0 0.0
      %381 = vmatpush1.msra.mxu0 0.0
      %382 = vmatprep.subr.mxu0 0.0
      %383 = vmatpush1.msra.mxu0 0.0
      %384 = vmatprep.subr.mxu0 0.0
      %385 = vmatpush1.msra.mxu0 0.0
      %386 = vmatprep.subr.mxu0 0.0
      %387 = vmatpush1.msra.mxu0 0.0
      %388 = vmatprep.subr.mxu0 0.0
      %389 = vmatpush1.msra.mxu0 0.0
      %390 = vmatprep.subr.mxu0 0.0
      %391 = vmatpush1.msra.mxu0 0.0
      %392 = vmatprep.subr.mxu0 0.0
      %393 = vmatpush1.msra.mxu0 0.0
      %394 = vmatprep.subr.mxu0 0.0
      %395 = vmatpush1.msra.mxu0 0.0
      %396 = vmatprep.mubr.f32.mxu0 0.0
      %397 = vmatmul.mubr.f32.gmra.mrb[0].mxu0 %v321
      %v398 = vpop.f32.mrb[0].mxu0
      %v399 = vadd.f32 0.0, %v398
      %v400 = vpop.f32.mrb[0].mxu0
      %401 = vmatprep.mubr.f32.mxu0 0.0
      %402 = vmatmul.mubr.f32.gmra.mrb[0].mxu0 %v324
      %v403 = vpop.f32.mrb[0].mxu0
      %v404 = vadd.f32 0.0, %v403
      %v405 = vpop.f32.mrb[0].mxu0
      %406 = vmatprep.mubr.f32.mxu0 0.0
      %407 = vmatmul.mubr.f32.gmra.mrb[0].mxu0 %v327
      %v408 = vpop.f32.mrb[0].mxu0
      %v409 = vadd.f32 0.0, %v408
      %v410 = vpop.f32.mrb[0].mxu0
      %411 = vdwg.mxu0
      %v413 = vsel %vm319, %v301, 0
      %v416 = vsel %vm319, %v302, 0
      %v419 = vsel %vm319, %v303, 0
      %v421 = vsel %vm329, %v300, 0
      %423 = vmatprep.subr.mxu0 0.0
      %424 = vmatpush1.msra.mxu0 %v298
      %425 = vmatprep.subr.mxu0 0.0
      %426 = vmatpush1.msra.mxu0 %v299
      %427 = vmatprep.subr.mxu0 0.0
      %428 = vmatpush1.msra.mxu0 %v421
      %429 = vmatprep.subr.mxu0 0.0
      %430 = vmatpush1.msra.mxu0 0.0
      %431 = vmatprep.subr.mxu0 0.0
      %432 = vmatpush1.msra.mxu0 0.0
      %433 = vmatprep.subr.mxu0 0.0
      %434 = vmatpush1.msra.mxu0 0.0
      %435 = vmatprep.subr.mxu0 0.0
      %436 = vmatpush1.msra.mxu0 0.0
      %437 = vmatprep.subr.mxu0 0.0
      %438 = vmatpush1.msra.mxu0 0.0
      %439 = vmatprep.subr.mxu0 0.0
      %440 = vmatpush1.msra.mxu0 0.0
      %441 = vmatprep.subr.mxu0 0.0
      %442 = vmatpush1.msra.mxu0 0.0
      %443 = vmatprep.subr.mxu0 0.0
      %444 = vmatpush1.msra.mxu0 0.0
      %445 = vmatprep.subr.mxu0 0.0
      %446 = vmatpush1.msra.mxu0 0.0
      %447 = vmatprep.subr.mxu0 0.0
      %448 = vmatpush1.msra.mxu0 0.0
      %449 = vmatprep.subr.mxu0 0.0
      %450 = vmatpush1.msra.mxu0 0.0
      %451 = vmatprep.subr.mxu0 0.0
      %452 = vmatpush1.msra.mxu0 0.0
      %453 = vmatprep.subr.mxu0 0.0
      %454 = vmatpush1.msra.mxu0 0.0
      %455 = vmatprep.subr.mxu0 0.0
      %456 = vmatpush1.msra.mxu0 0.0
      %457 = vmatprep.subr.mxu0 0.0
      %458 = vmatpush1.msra.mxu0 0.0
      %459 = vmatprep.subr.mxu0 0.0
      %460 = vmatpush1.msra.mxu0 0.0
      %461 = vmatprep.subr.mxu0 0.0
      %462 = vmatpush1.msra.mxu0 0.0
      %463 = vmatprep.subr.mxu0 0.0
      %464 = vmatpush1.msra.mxu0 0.0
      %465 = vmatprep.subr.mxu0 0.0
      %466 = vmatpush1.msra.mxu0 0.0
      %467 = vmatprep.subr.mxu0 0.0
      %468 = vmatpush1.msra.mxu0 0.0
      %469 = vmatprep.subr.mxu0 0.0
      %470 = vmatpush1.msra.mxu0 0.0
      %471 = vmatprep.subr.mxu0 0.0
      %472 = vmatpush1.msra.mxu0 0.0
      %473 = vmatprep.subr.mxu0 0.0
      %474 = vmatpush1.msra.mxu0 0.0
      %475 = vmatprep.subr.mxu0 0.0
      %476 = vmatpush1.msra.mxu0 0.0
      %477 = vmatprep.subr.mxu0 0.0
      %478 = vmatpush1.msra.mxu0 0.0
      %479 = vmatprep.subr.mxu0 0.0
      %480 = vmatpush1.msra.mxu0 0.0
      %481 = vmatprep.subr.mxu0 0.0
      %482 = vmatpush1.msra.mxu0 0.0
      %483 = vmatprep.subr.mxu0 0.0
      %484 = vmatpush1.msra.mxu0 0.0
      %485 = vmatprep.subr.mxu0 0.0
      %486 = vmatpush1.msra.mxu0 0.0
      %487 = vmatprep.mubr.f32.mxu0 0.0
      %488 = vmatmul.mubr.f32.gmra.mrb[0].mxu0 %v413
      %v489 = vpop.f32.mrb[0].mxu0
      %v490 = vadd.f32 %v399, %v489
      %v491 = vpop.f32.mrb[0].mxu0
      %492 = vmatprep.mubr.f32.mxu0 0.0
      %493 = vmatmul.mubr.f32.gmra.mrb[0].mxu0 %v416
      %v494 = vpop.f32.mrb[0].mxu0
      %v495 = vadd.f32 %v404, %v494
      %v496 = vpop.f32.mrb[0].mxu0
      %497 = vmatprep.mubr.f32.mxu0 0.0
      %498 = vmatmul.mubr.f32.gmra.mrb[0].mxu0 %v419
      %v499 = vpop.f32.mrb[0].mxu0
      %v500 = vadd.f32 %v409, %v499
      %v501 = vpop.f32.mrb[0].mxu0
      %502 = vdwg.mxu0
      %s503 = scalar_lea.vmem %s2, 48
      %v504 = vld [vmem:[%s503] sm:$0xff]
      %v505 = vld [vmem:[%s503 + $0x8] sm:$0xff]
      %v506 = vld [vmem:[%s503 + $0x10] sm:$0xff]
      %507 = vrot.lane.b32.xlu0 %v298, 126
      %v508 = vpop.permute.xlu0 %507
      %509 = vrot.lane.b32.xlu0 %v299, 126
      %v510 = vpop.permute.xlu0 %509
      %511 = vrot.lane.b32.xlu0 %v300, 126
      %v512 = vpop.permute.xlu0 %511
      %v516 = vsel %vm319, %v504, 0
      %v519 = vsel %vm319, %v505, 0
      %v522 = vsel %vm319, %v506, 0
      %v524 = vsel %vm329, %v512, 0
      %526 = vmatprep.subr.mxu0 0.0
      %527 = vmatpush1.msra.mxu0 %v508
      %528 = vmatprep.subr.mxu0 0.0
      %529 = vmatpush1.msra.mxu0 %v510
      %530 = vmatprep.subr.mxu0 0.0
      %531 = vmatpush1.msra.mxu0 %v524
      %532 = vmatprep.subr.mxu0 0.0
      %533 = vmatpush1.msra.mxu0 0.0
      %534 = vmatprep.subr.mxu0 0.0
      %535 = vmatpush1.msra.mxu0 0.0
      %536 = vmatprep.subr.mxu0 0.0
      %537 = vmatpush1.msra.mxu0 0.0
      %538 = vmatprep.subr.mxu0 0.0
      %539 = vmatpush1.msra.mxu0 0.0
      %540 = vmatprep.subr.mxu0 0.0
      %541 = vmatpush1.msra.mxu0 0.0
      %542 = vmatprep.subr.mxu0 0.0
      %543 = vmatpush1.msra.mxu0 0.0
      %544 = vmatprep.subr.mxu0 0.0
      %545 = vmatpush1.msra.mxu0 0.0
      %546 = vmatprep.subr.mxu0 0.0
      %547 = vmatpush1.msra.mxu0 0.0
      %548 = vmatprep.subr.mxu0 0.0
      %549 = vmatpush1.msra.mxu0 0.0
      %550 = vmatprep.subr.mxu0 0.0
      %551 = vmatpush1.msra.mxu0 0.0
      %552 = vmatprep.subr.mxu0 0.0
      %553 = vmatpush1.msra.mxu0 0.0
      %554 = vmatprep.subr.mxu0 0.0
      %555 = vmatpush1.msra.mxu0 0.0
      %556 = vmatprep.subr.mxu0 0.0
      %557 = vmatpush1.msra.mxu0 0.0
      %558 = vmatprep.subr.mxu0 0.0
      %559 = vmatpush1.msra.mxu0 0.0
      %560 = vmatprep.subr.mxu0 0.0
      %561 = vmatpush1.msra.mxu0 0.0
      %562 = vmatprep.subr.mxu0 0.0
      %563 = vmatpush1.msra.mxu0 0.0
      %564 = vmatprep.subr.mxu0 0.0
      %565 = vmatpush1.msra.mxu0 0.0
      %566 = vmatprep.subr.mxu0 0.0
      %567 = vmatpush1.msra.mxu0 0.0
      %568 = vmatprep.subr.mxu0 0.0
      %569 = vmatpush1.msra.mxu0 0.0
      %570 = vmatprep.subr.mxu0 0.0
      %571 = vmatpush1.msra.mxu0 0.0
      %572 = vmatprep.subr.mxu0 0.0
      %573 = vmatpush1.msra.mxu0 0.0
      %574 = vmatprep.subr.mxu0 0.0
      %575 = vmatpush1.msra.mxu0 0.0
      %576 = vmatprep.subr.mxu0 0.0
      %577 = vmatpush1.msra.mxu0 0.0
      %578 = vmatprep.subr.mxu0 0.0
      %579 = vmatpush1.msra.mxu0 0.0
      %580 = vmatprep.subr.mxu0 0.0
      %581 = vmatpush1.msra.mxu0 0.0
      %582 = vmatprep.subr.mxu0 0.0
      %583 = vmatpush1.msra.mxu0 0.0
      %584 = vmatprep.subr.mxu0 0.0
      %585 = vmatpush1.msra.mxu0 0.0
      %586 = vmatprep.subr.mxu0 0.0
      %587 = vmatpush1.msra.mxu0 0.0
      %588 = vmatprep.subr.mxu0 0.0
      %589 = vmatpush1.msra.mxu0 0.0
      %590 = vmatprep.mubr.f32.mxu0 0.0
      %591 = vmatmul.mubr.f32.gmra.mrb[0].mxu0 %v516
      %v592 = vpop.f32.mrb[0].mxu0
      %v593 = vadd.f32 0.0, %v592
      %v594 = vpop.f32.mrb[0].mxu0
      %595 = vmatprep.mubr.f32.mxu0 0.0
      %596 = vmatmul.mubr.f32.gmra.mrb[0].mxu0 %v519
      %v597 = vpop.f32.mrb[0].mxu0
      %v598 = vadd.f32 0.0, %v597
      %v599 = vpop.f32.mrb[0].mxu0
      %600 = vmatprep.mubr.f32.mxu0 0.0
      %601 = vmatmul.mubr.f32.gmra.mrb[0].mxu0 %v522
      %v602 = vpop.f32.mrb[0].mxu0
      %v603 = vadd.f32 0.0, %v602
      %v604 = vpop.f32.mrb[0].mxu0
      %605 = vdwg.mxu0
      %v606 = vadd.f32 %v490, %v593
      %v607 = vadd.f32 %v495, %v598
      %v608 = vadd.f32 %v500, %v603
      %v609 = vld [vmem:[%s3] sm:$0xff]
      %v610 = vld [vmem:[%s3 + $0x8] sm:$0xff]
      %v611 = vld [vmem:[%s3 + $0x10] sm:$0xff]
      %613 = vset.pattern.permute.xlu0 0
      %614 = vperm.xlu0 %613, %v609
      %v615 = vpop.permute.xlu0 %614
      %618 = vset.pattern.permute.xlu0 0
      %619 = vperm.xlu0 %618, %v610
      %v620 = vpop.permute.xlu0 %619
      %623 = vset.pattern.permute.xlu0 0
      %624 = vperm.xlu0 %623, %v611
      %v625 = vpop.permute.xlu0 %624
      %v627 = vmul.f32 %v606, %v615
      %v628 = vmul.f32 %v607, %v620
      %v629 = vmul.f32 %v608, %v625
      %630 = vset.pattern.permute.xlu0 1
      %631 = vperm.xlu0 %630, %v609
      %v632 = vpop.permute.xlu0 %631
      %634 = vset.pattern.permute.xlu0 1
      %635 = vperm.xlu0 %634, %v610
      %v636 = vpop.permute.xlu0 %635
      %638 = vset.pattern.permute.xlu0 1
      %639 = vperm.xlu0 %638, %v611
      %v640 = vpop.permute.xlu0 %639
      %v642 = vadd.f32 %v627, %v632
      %v643 = vadd.f32 %v628, %v636
      %v644 = vadd.f32 %v629, %v640
      %vm645 = vcmp.gt.f32.partialorder %v642, 0.0
      %vm646 = vcmp.gt.f32.partialorder %v643, 0.0
      %vm647 = vcmp.gt.f32.partialorder %v644, 0.0
      %v648 = vmul.f32 %v642, 1.442695
      %v649 = vpow.pop %v648
      %v650 = vmul.f32 %v643, 1.442695
      %v651 = vpow.pop %v650
      %v652 = vmul.f32 %v644, 1.442695
      %v653 = vpow.pop %v652
      %v654 = vsub.f32 %v649, 1.0
      %v655 = vsub.f32 %v651, 1.0
      %v656 = vsub.f32 %v653, 1.0
      %v657 = vmul.f32 %v654, 1.6732632
      %v658 = vmul.f32 %v655, 1.6732632
      %v659 = vmul.f32 %v656, 1.6732632
      %v660 = vsel %vm645, %v642, %v657
      %v661 = vsel %vm646, %v643, %v658
      %v662 = vsel %vm647, %v644, %v659
      %v663 = vmul.f32 %v660, 1.050701
      %v664 = vmul.f32 %v661, 1.050701
      %v665 = vmul.f32 %v662, 1.050701
      %vm666 = vcmask 130048
      %667 = vst.msk [vmem:[%s262] sm:$0xff] %vm666, %v663
      %668 = vst.msk [vmem:[%s262 + $0x8] sm:$0xff] %vm666, %v664
      %vm669 = vcmask 128000
      %670 = vst.msk [vmem:[%s262 + $0x10] sm:$0x3f] %vm669, %v665
      %p671 = scmp.lt.s32.totalorder %s19, 1
      %s672 = scalar_select %p671, %s19, 1
      %p673 = scmp.lt.s32.totalorder %s20, 0
      %s674 = scalar_select %p673, %s20, 0
      %s675 = smul.addr %s672, 3
      %s676 = sadd.s32 %s674, %s675
      %s677 = smul.addr %s676, 8
      %s678 = scalar_lea.vmem %s4, %s677
      // Predicated region
      $region37: #{i2c_block_v1.3} parent=35 // pred_check
        %p679 = pneg %p145
      $region38: #{i2c_block_v1.3} parent=35 // pred_check_branch
        %681 = sbr.rel (%p679) target = $region40
      $region39: #{i2c_block_v1.3} parent=35 // pred_region
        _
      $region40: #{i2c_block_v1.3} parent=35 // pred_fallthru
        _
    $region36: #{i2c_block_v1.3} parent=5 // pred_fallthru
      _
    %p682 = scmp.le.s32.totalorder 2, %s10
    // Predicated region
    $region41: #{i2c_block_v1.3} parent=5 // pred_check
      %p683 = pneg %p682
    $region42: #{i2c_block_v1.3} parent=5 // pred_check_branch
      %685 = sbr.rel (%p683) target = $region44
    $region43: #{i2c_block_v1.3} parent=5 // pred_region
      %s686 = ssub.s32 %s10, 2
      // Predicated region
      $region45: #{i2c_block_v1.3} parent=43 // pred_check
        %p687 = pneg %p151
      $region46: #{i2c_block_v1.3} parent=43 // pred_check_branch
        %689 = sbr.rel (%p687) target = $region48
      $region47: #{i2c_block_v1.3} parent=43 // pred_region
        %p690 = scmp.lt.s32.totalorder %s21, 1
        %s691 = scalar_select %p690, %s21, 1
        %p692 = scmp.lt.s32.totalorder %s22, 0
        %s693 = scalar_select %p692, %s22, 0
        %s694 = smul.addr %s691, 3
        %s695 = sadd.s32 %s693, %s694
        %s696 = smul.addr %s695, 8
        %s697 = scalar_lea.vmem %s4, %s696
      $region48: #{i2c_block_v1.3} parent=43 // pred_fallthru
        _
    $region44: #{i2c_block_v1.3} parent=5 // pred_fallthru
      _
  $region6: #{i2c_block_v1.3} parent=0 // loop_footer
    %s14 = sadd.s32 1, %s10
  $region7: #{i2c_block_v1.3} parent=0 // loop_footer_branch
    %9 = sbr.rel target = $region3
  $region8: #{i2c_block_v1.3} parent=0 // loop_exit
    _

</llo_original>
